<compile_context>
chip_gen: v5e
topology: v5e:2x2
jax: 0.10.0
libtpu: 0.0.40
codegen_flags: <defaults>
</compile_context>

<pallas_src>
import functools
import math

import jax
import jax.numpy as jnp
from jax import lax
from jax.experimental import pallas as pl
from jax.experimental.pallas import tpu as pltpu


def _round_up(x, m):
    return (x + m - 1) // m * m


# ---------------------------------------------------------------------------
# Kernel: one grid step = one (batch block, layer).
# ---------------------------------------------------------------------------
def _make_rnn_kernel(*, BB, HP, RP, TC, NC_FULL, T_REM):
    G4 = 4 * HP

    def kernel(x_ref, w_ih_ref, w_hh_ref, b_ref, fc_w_ref, fc_b_ref,
               out_ref, seq_sc):
        layer = pl.program_id(1)
        n_layers = pl.num_programs(1)

        # Layer 0: stage this batch block's input sequence into the
        # VMEM-resident inter-layer buffer (bf16, never touches HBM again).
        @pl.when(layer == 0)
        def _():
            seq_sc[...] = x_ref[...]

        w_ih = w_ih_ref[0]           # (RP, 4*HP) bf16   (rows >= real D are 0)
        w_hh = w_hh_ref[0]           # (HP, 4*HP) bf16
        bias = b_ref[0]              # (1, 4*HP)  f32  (= b_ih + b_hh)
        write_seq = layer < n_layers - 1

        def cell_step(gx_t, h, c):
            # Only h @ W_hh is left on the serial critical path.
            gates = gx_t + jnp.dot(h, w_hh, preferred_element_type=jnp.float32)
            # Packed [i, f, o, g]: one wide sigmoid slab + one tanh slab.
            ifo = jax.nn.sigmoid(gates[:, :3 * HP])
            g = jnp.tanh(gates[:, 3 * HP:])
            c_new = ifo[:, HP:2 * HP] * c + ifo[:, :HP] * g
            h_new = (ifo[:, 2 * HP:3 * HP] * jnp.tanh(c_new)).astype(jnp.bfloat16)
            return h_new, c_new

        def run_chunk(t0, n_steps, h, c):
            # Hoisted input projection for n_steps timesteps at once
            # (one (n_steps*BB, RP) @ (RP, 4HP) MXU matmul).
            xc = seq_sc[pl.ds(t0, n_steps)]                       # bf16
            gx = (jnp.dot(xc.reshape(n_steps * BB, RP), w_ih,
                          preferred_element_type=jnp.float32) + bias
                  ).reshape(n_steps, BB, G4)
            for t in range(n_steps):                              # small static unroll
                h, c = cell_step(gx[t], h, c)

                @pl.when(write_seq)                               # last layer: no writes
                def _(h=h, t=t):
                    seq_sc[t0 + t, :, :HP] = h
            return h, c

        h = jnp.zeros((BB, HP), jnp.bfloat16)
        c = jnp.zeros((BB, HP), jnp.float32)

        if NC_FULL >= 2:
            # fori_loop over chunks keeps program size / live ranges bounded
            # for long sequences; the (h_bf16, c_f32) carry is tiny.
            def chunk_body(ci, carry):
                return run_chunk(ci * TC, TC, *carry)
            h, c = lax.fori_loop(0, NC_FULL, chunk_body, (h, c))
        elif NC_FULL == 1:
            h, c = run_chunk(0, TC, h, c)
        if T_REM > 0:
            h, c = run_chunk(NC_FULL * TC, T_REM, h, c)

        # TODO(synk): inter-layer dropout omitted (eval semantics).

        # Fused fc on the resident final hidden state (last layer only).
        @pl.when(layer == n_layers - 1)
        def _():
            out_ref[...] = (
                jnp.dot(h, fc_w_ref[...], preferred_element_type=jnp.float32)
                + fc_b_ref[...]
            )

    return kernel


# ---------------------------------------------------------------------------
# Wrapper
# ---------------------------------------------------------------------------
@functools.partial(jax.jit, static_argnames=("output_size",))
def rnn_model_forward(x, params, *, output_size):
    """x: (B, T, input_size), batch_first — same as the PyTorch module."""
    B, T, D = x.shape
    w_ih_all = params["w_ih"]                 # (L, RP, 4*HP) bf16
    w_hh_all = params["w_hh"]                 # (L, HP, 4*HP) bf16
    b_all = params["b"]                       # (L, 1, 4*HP)  f32
    fc_w = params["fc_w"]                     # (HP, OP)      bf16
    fc_b = params["fc_b"]                     # (1, OP)       f32
    L, RP, G4 = w_ih_all.shape
    HP = w_hh_all.shape[1]
    OP = fc_w.shape[1]

    # Batch blocking: keep whole (rounded) batch in one block up to the MXU
    # height; larger batches split into "parallel" blocks (2nd TC on v7x).
    BB = min(256, _round_up(B, 8))
    Bpad = _round_up(B, BB)
    nb = Bpad // BB

    # Time chunk for the hoisted projection: bound f32 gate buffer ~2 MiB and
    # cap the static unroll at 16 timesteps.
    gx_budget = 2 * 2 ** 20
    TC = max(1, min(T, 16, gx_budget // max(1, BB * G4 * 4)))
    NC_FULL, T_REM = divmod(T, TC)

    # bf16 input (half the HBM->VMEM bytes), time-major, pad batch + features.
    x_tm = jnp.transpose(x.astype(jnp.bfloat16), (1, 0, 2))
    x_tm = jnp.pad(x_tm, ((0, 0), (0, Bpad - B), (0, RP - D)))

    # VMEM budget estimate (double-buffered inputs + scratch + gate temps).
    est = (2 * (T * BB * RP * 2                                  # x block
                + (RP * G4 + HP * G4 + HP * OP) * 2              # bf16 weights
                + (G4 + OP) * 4                                  # biases
                + BB * OP * 4)                                   # out block
           + T * BB * RP * 2                                     # seq scratch
           + 4 * TC * BB * G4 * 4)                               # gx + temps
    vmem_limit = int(min(64 * 2 ** 20, max(32 * 2 ** 20, 2 * est)))

    kernel = _make_rnn_kernel(BB=BB, HP=HP, RP=RP, TC=TC,
                              NC_FULL=NC_FULL, T_REM=T_REM)

    out_pad = pl.pallas_call(
        kernel,
        out_shape=jax.ShapeDtypeStruct((Bpad, OP), jnp.float32),
        grid=(nb, L),
        in_specs=[
            pl.BlockSpec((T, BB, RP), lambda b, l: (0, b, 0)),   # x (per batch block)
            pl.BlockSpec((1, RP, G4), lambda b, l: (l, 0, 0)),   # w_ih[layer]
            pl.BlockSpec((1, HP, G4), lambda b, l: (l, 0, 0)),   # w_hh[layer]
            pl.BlockSpec((1, 1, G4), lambda b, l: (l, 0, 0)),    # b[layer]
            pl.BlockSpec((HP, OP), lambda b, l: (0, 0)),         # fc_w
            pl.BlockSpec((1, OP), lambda b, l: (0, 0)),          # fc_b
        ],
        out_specs=pl.BlockSpec((BB, OP), lambda b, l: (b, 0)),
        scratch_shapes=[
            pltpu.VMEM((T, BB, RP), jnp.bfloat16),               # inter-layer sequence
        ],
        compiler_params=pltpu.CompilerParams(
            dimension_semantics=("parallel", "arbitrary"),
            vmem_limit_bytes=vmem_limit,
        ),
    )(x_tm, w_ih_all, w_hh_all, b_all, fc_w, fc_b)

    return out_pad[:B, :output_size]


# ---------------------------------------------------------------------------
# PyTorch-parity init: Uniform(-1/sqrt(H), 1/sqrt(H)); weights stored
# pre-transposed, gate-repacked [i, f, o, g], padded, stacked per layer, bf16.
# ---------------------------------------------------------------------------
def init_params(key, input_size, hidden_size, num_layers, output_size):
    H, D, O = hidden_size, input_size, output_size
    HP = _round_up(H, 128)
    DP = _round_up(D, 128)
    OP = _round_up(O, 128)
    RP = max(DP, HP)                    # shared row-pad so layer inputs are uniform
    k = 1.0 / math.sqrt(H)

    torch2pack = (0, 1, 3, 2)           # torch [i, f, g, o] -> packed [i, f, o, g]

    def pack_w(w, rows, rows_pad):
        out = jnp.zeros((rows_pad, 4 * HP), jnp.float32)
        for gs, gd in enumerate(torch2pack):
            out = out.at[:rows, gd * HP:gd * HP + H].set(w[:, gs * H:(gs + 1) * H])
        return out

    def pack_b(b):
        out = jnp.zeros((4 * HP,), jnp.float32)
        for gs, gd in enumerate(torch2pack):
            out = out.at[gd * HP:gd * HP + H].set(b[gs * H:(gs + 1) * H])
        return out

    w_ih_l, w_hh_l, b_l = [], [], []
    for layer in range(num_layers):
        d_in = D if layer == 0 else H
        key, k1, k2, k3, k4 = jax.random.split(key, 5)
        w_ih = jax.random.uniform(k1, (d_in, 4 * H), jnp.float32, -k, k)
        w_hh = jax.random.uniform(k2, (H, 4 * H), jnp.float32, -k, k)
        b_ih = jax.random.uniform(k3, (4 * H,), jnp.float32, -k, k)
        b_hh = jax.random.uniform(k4, (4 * H,), jnp.float32, -k, k)
        w_ih_l.append(pack_w(w_ih, d_in, RP))
        w_hh_l.append(pack_w(w_hh, H, HP))
        b_l.append(pack_b(b_ih + b_hh))

    key, k1, k2 = jax.random.split(key, 3)
    fc_w = jax.random.uniform(k1, (H, O), jnp.float32, -k, k)
    fc_b = jax.random.uniform(k2, (O,), jnp.float32, -k, k)
    fc_w_p = (jnp.zeros((HP, OP), jnp.float32)
              .at[:H, :O].set(fc_w).astype(jnp.bfloat16))
    fc_b_p = jnp.zeros((1, OP), jnp.float32).at[0, :O].set(fc_b)

    return {
        "w_ih": jnp.stack(w_ih_l).astype(jnp.bfloat16),   # (L, RP, 4*HP)
        "w_hh": jnp.stack(w_hh_l).astype(jnp.bfloat16),   # (L, HP, 4*HP)
        "b": jnp.stack(b_l)[:, None, :],                  # (L, 1, 4*HP) f32
        "fc_w": fc_w_p,                                   # (HP, OP) bf16
        "fc_b": fc_b_p,                                   # (1, OP)  f32
    }


if __name__ == "__main__":
    batch = 2
    seq = 8
    input_size = 16
    hidden_size = 32
    num_layers = 2
    output_size = 10
    dropout = 0.1  # unused at inference (eval semantics)

    key = jax.random.PRNGKey(0)
    key, xk = jax.random.split(key)
    x = jax.random.normal(xk, (batch, seq, input_size), dtype=jnp.float32)

    params = init_params(key, input_size, hidden_size, num_layers, output_size)

    out = rnn_model_forward(x, params, output_size=output_size)
    jax.block_until_ready(out)
    assert out.shape == (batch, output_size)
    assert bool(jnp.all(jnp.isfinite(out)))
    print("KERNEL_OK")
</pallas_src>

<mosaic_0001>
module attributes {stable_mosaic.version = 11 : i64} {
  func.func @kernel(%arg0: i32, %arg1: i32, %arg2: memref<8x8x128xbf16, #tpu.memory_space<vmem>>, %arg3: memref<1x128x512xbf16, #tpu.memory_space<vmem>>, %arg4: memref<1x128x512xbf16, #tpu.memory_space<vmem>>, %arg5: memref<1x1x512xf32, #tpu.memory_space<vmem>>, %arg6: memref<128x128xbf16, #tpu.memory_space<vmem>>, %arg7: memref<1x128xf32, #tpu.memory_space<vmem>>, %arg8: memref<8x128xf32, #tpu.memory_space<vmem>>, %arg9: memref<8x8x128xbf16, #tpu.memory_space<vmem>>) attributes {dimension_semantics = [#tpu.dimension_semantics<parallel>, #tpu.dimension_semantics<arbitrary>], iteration_bounds = array<i64: 1, 2>, scalar_prefetch = 0 : i64, scratch_operands = 1 : i64, tpu.core_type = #tpu.core_type<tc>, window_params = [{transform_indices = @transform_0, window_bounds = array<i64: 8, 8, 128>}, {transform_indices = @transform_1, window_bounds = array<i64: 1, 128, 512>}, {transform_indices = @transform_2, window_bounds = array<i64: 1, 128, 512>}, {transform_indices = @transform_3, window_bounds = array<i64: 1, 1, 512>}, {pipeline_mode = #tpu.pipeline_mode<synchronous>, transform_indices = @transform_4, window_bounds = array<i64: 128, 128>}, {pipeline_mode = #tpu.pipeline_mode<synchronous>, transform_indices = @transform_5, window_bounds = array<i64: 1, 128>}, {transform_indices = @transform_6, window_bounds = array<i64: 8, 128>}]} {
    %c0_i32 = arith.constant 0 : i32
    %0 = arith.cmpi eq, %arg1, %c0_i32 : i32
    %1 = arith.extui %0 : i1 to i32
    %c0_i32_0 = arith.constant 0 : i32
    %2 = arith.cmpi ne, %1, %c0_i32_0 : i32
    scf.if %2 {
      %c0_40 = arith.constant 0 : index
      %c0_41 = arith.constant 0 : index
      %c0_42 = arith.constant 0 : index
      %205 = vector.load %arg2[%c0_40, %c0_41, %c0_42] : memref<8x8x128xbf16, #tpu.memory_space<vmem>>, vector<8x8x128xbf16>
      %c0_43 = arith.constant 0 : index
      %c0_44 = arith.constant 0 : index
      %c0_45 = arith.constant 0 : index
      %206 = vector.load %arg9[%c0_43, %c0_44, %c0_45] : memref<8x8x128xbf16, #tpu.memory_space<vmem>>, vector<8x8x128xbf16>
      tpu.vector_store %arg9[%c0_43, %c0_44, %c0_45], %205 {strides = array<i32>} : memref<8x8x128xbf16, #tpu.memory_space<vmem>>, vector<8x8x128xbf16>,
    } else {
    }
    %c0 = arith.constant 0 : index
    %c0_1 = arith.constant 0 : index
    %c0_2 = arith.constant 0 : index
    %3 = vector.load %arg3[%c0, %c0_1, %c0_2] : memref<1x128x512xbf16, #tpu.memory_space<vmem>>, vector<1x128x512xbf16>
    %4 = vector.shape_cast %3 : vector<1x128x512xbf16> to vector<128x512xbf16>
    %c0_3 = arith.constant 0 : index
    %c0_4 = arith.constant 0 : index
    %c0_5 = arith.constant 0 : index
    %5 = vector.load %arg4[%c0_3, %c0_4, %c0_5] : memref<1x128x512xbf16, #tpu.memory_space<vmem>>, vector<1x128x512xbf16>
    %6 = vector.shape_cast %5 : vector<1x128x512xbf16> to vector<128x512xbf16>
    %c0_6 = arith.constant 0 : index
    %c0_7 = arith.constant 0 : index
    %c0_8 = arith.constant 0 : index
    %7 = vector.load %arg5[%c0_6, %c0_7, %c0_8] : memref<1x1x512xf32, #tpu.memory_space<vmem>>, vector<1x1x512xf32>
    %8 = vector.shape_cast %7 : vector<1x1x512xf32> to vector<1x512xf32>
    %c1_i32 = arith.constant 1 : i32
    %9 = arith.cmpi slt, %arg1, %c1_i32 : i32
    %cst = arith.constant 0.000000e+00 : bf16
    %10 = vector.broadcast %cst : bf16 to vector<8x128xbf16>
    %cst_9 = arith.constant 0.000000e+00 : f32
    %11 = vector.broadcast %cst_9 : f32 to vector<8x128xf32>
    %c0_10 = arith.constant 0 : index
    %c0_11 = arith.constant 0 : index
    %c0_12 = arith.constant 0 : index
    %12 = vector.load %arg9[%c0_10, %c0_11, %c0_12] : memref<8x8x128xbf16, #tpu.memory_space<vmem>>, vector<8x8x128xbf16>
    %13 = vector.shape_cast %12 : vector<8x8x128xbf16> to vector<64x128xbf16>
    %cst_13 = arith.constant dense<0.000000e+00> : vector<64x512xf32>
    %14 = tpu.matmul %13, %4, %cst_13 {dimension_numbers = #tpu.dot_dimension_numbers<[1], [0], [0], [1], [0, 0, 1, 1], [], []>} : vector<64x128xbf16>, vector<128x512xbf16>, vector<64x512xf32> -> vector<64x512xf32>
    %15 = vector.broadcast %8 : vector<1x512xf32> to vector<64x512xf32>
    %16 = arith.addf %14, %15 : vector<64x512xf32>
    %17 = vector.shape_cast %16 : vector<64x512xf32> to vector<8x8x512xf32>
    %18 = vector.extract_strided_slice %17 {offsets = [0, 0, 0], sizes = [1, 8, 512], strides = [1, 1, 1]} : vector<8x8x512xf32> to vector<1x8x512xf32>
    %19 = vector.shape_cast %18 : vector<1x8x512xf32> to vector<8x512xf32>
    %cst_14 = arith.constant dense<0.000000e+00> : vector<8x512xf32>
    %20 = tpu.matmul %10, %6, %cst_14 {dimension_numbers = #tpu.dot_dimension_numbers<[1], [0], [0], [1], [0, 0, 1, 1], [], []>} : vector<8x128xbf16>, vector<128x512xbf16>, vector<8x512xf32> -> vector<8x512xf32>
    %21 = arith.addf %19, %20 : vector<8x512xf32>
    %22 = vector.extract_strided_slice %21 {offsets = [0, 0], sizes = [8, 384], strides = [1, 1]} : vector<8x512xf32> to vector<8x384xf32>
    %23 = arith.negf %22 : vector<8x384xf32>
    %24 = math.exp %23 : vector<8x384xf32>
    %cst_15 = arith.constant 1.000000e+00 : f32
    %25 = vector.broadcast %cst_15 : f32 to vector<8x384xf32>
    %26 = arith.addf %25, %24 : vector<8x384xf32>
    %27 = arith.divf %25, %26 : vector<8x384xf32>
    %28 = vector.extract_strided_slice %21 {offsets = [0, 384], sizes = [8, 128], strides = [1, 1]} : vector<8x512xf32> to vector<8x128xf32>
    %29 = math.tanh %28 : vector<8x128xf32>
    %30 = vector.extract_strided_slice %27 {offsets = [0, 128], sizes = [8, 128], strides = [1, 1]} : vector<8x384xf32> to vector<8x128xf32>
    %31 = arith.mulf %30, %11 : vector<8x128xf32>
    %32 = vector.extract_strided_slice %27 {offsets = [0, 0], sizes = [8, 128], strides = [1, 1]} : vector<8x384xf32> to vector<8x128xf32>
    %33 = arith.mulf %32, %29 : vector<8x128xf32>
    %34 = arith.addf %31, %33 : vector<8x128xf32>
    %35 = vector.extract_strided_slice %27 {offsets = [0, 256], sizes = [8, 128], strides = [1, 1]} : vector<8x384xf32> to vector<8x128xf32>
    %36 = math.tanh %34 : vector<8x128xf32>
    %37 = arith.mulf %35, %36 : vector<8x128xf32>
    %38 = arith.truncf %37 : vector<8x128xf32> to vector<8x128xbf16>
    %39 = arith.extui %9 : i1 to i32
    %c0_i32_16 = arith.constant 0 : i32
    %40 = arith.cmpi ne, %39, %c0_i32_16 : i32
    scf.if %40 {
      %c0_40 = arith.constant 0 : index
      %c0_41 = arith.constant 0 : index
      %c0_42 = arith.constant 0 : index
      %205 = vector.load %arg9[%c0_40, %c0_41, %c0_42] : memref<8x8x128xbf16, #tpu.memory_space<vmem>>, vector<1x8x128xbf16>
      %206 = vector.shape_cast %205 : vector<1x8x128xbf16> to vector<8x128xbf16>
      %207 = vector.shape_cast %38 : vector<8x128xbf16> to vector<1x8x128xbf16>
      tpu.vector_store %arg9[%c0_40, %c0_41, %c0_42], %207 {strides = array<i32>} : memref<8x8x128xbf16, #tpu.memory_space<vmem>>, vector<1x8x128xbf16>,
    } else {
    }
    %41 = vector.extract_strided_slice %17 {offsets = [1, 0, 0], sizes = [1, 8, 512], strides = [1, 1, 1]} : vector<8x8x512xf32> to vector<1x8x512xf32>
    %42 = vector.shape_cast %41 : vector<1x8x512xf32> to vector<8x512xf32>
    %cst_17 = arith.constant dense<0.000000e+00> : vector<8x512xf32>
    %43 = tpu.matmul %38, %6, %cst_17 {dimension_numbers = #tpu.dot_dimension_numbers<[1], [0], [0], [1], [0, 0, 1, 1], [], []>} : vector<8x128xbf16>, vector<128x512xbf16>, vector<8x512xf32> -> vector<8x512xf32>
    %44 = arith.addf %42, %43 : vector<8x512xf32>
    %45 = vector.extract_strided_slice %44 {offsets = [0, 0], sizes = [8, 384], strides = [1, 1]} : vector<8x512xf32> to vector<8x384xf32>
    %46 = arith.negf %45 : vector<8x384xf32>
    %47 = math.exp %46 : vector<8x384xf32>
    %cst_18 = arith.constant 1.000000e+00 : f32
    %48 = vector.broadcast %cst_18 : f32 to vector<8x384xf32>
    %49 = arith.addf %48, %47 : vector<8x384xf32>
    %50 = arith.divf %48, %49 : vector<8x384xf32>
    %51 = vector.extract_strided_slice %44 {offsets = [0, 384], sizes = [8, 128], strides = [1, 1]} : vector<8x512xf32> to vector<8x128xf32>
    %52 = math.tanh %51 : vector<8x128xf32>
    %53 = vector.extract_strided_slice %50 {offsets = [0, 128], sizes = [8, 128], strides = [1, 1]} : vector<8x384xf32> to vector<8x128xf32>
    %54 = arith.mulf %53, %34 : vector<8x128xf32>
    %55 = vector.extract_strided_slice %50 {offsets = [0, 0], sizes = [8, 128], strides = [1, 1]} : vector<8x384xf32> to vector<8x128xf32>
    %56 = arith.mulf %55, %52 : vector<8x128xf32>
    %57 = arith.addf %54, %56 : vector<8x128xf32>
    %58 = vector.extract_strided_slice %50 {offsets = [0, 256], sizes = [8, 128], strides = [1, 1]} : vector<8x384xf32> to vector<8x128xf32>
    %59 = math.tanh %57 : vector<8x128xf32>
    %60 = arith.mulf %58, %59 : vector<8x128xf32>
    %61 = arith.truncf %60 : vector<8x128xf32> to vector<8x128xbf16>
    %62 = arith.extui %9 : i1 to i32
    %c0_i32_19 = arith.constant 0 : i32
    %63 = arith.cmpi ne, %62, %c0_i32_19 : i32
    scf.if %63 {
      %c1 = arith.constant 1 : index
      %c0_40 = arith.constant 0 : index
      %c0_41 = arith.constant 0 : index
      %205 = vector.load %arg9[%c1, %c0_40, %c0_41] : memref<8x8x128xbf16, #tpu.memory_space<vmem>>, vector<1x8x128xbf16>
      %206 = vector.shape_cast %205 : vector<1x8x128xbf16> to vector<8x128xbf16>
      %207 = vector.shape_cast %61 : vector<8x128xbf16> to vector<1x8x128xbf16>
      tpu.vector_store %arg9[%c1, %c0_40, %c0_41], %207 {strides = array<i32>} : memref<8x8x128xbf16, #tpu.memory_space<vmem>>, vector<1x8x128xbf16>,
    } else {
    }
    %64 = vector.extract_strided_slice %17 {offsets = [2, 0, 0], sizes = [1, 8, 512], strides = [1, 1, 1]} : vector<8x8x512xf32> to vector<1x8x512xf32>
    %65 = vector.shape_cast %64 : vector<1x8x512xf32> to vector<8x512xf32>
    %cst_20 = arith.constant dense<0.000000e+00> : vector<8x512xf32>
    %66 = tpu.matmul %61, %6, %cst_20 {dimension_numbers = #tpu.dot_dimension_numbers<[1], [0], [0], [1], [0, 0, 1, 1], [], []>} : vector<8x128xbf16>, vector<128x512xbf16>, vector<8x512xf32> -> vector<8x512xf32>
    %67 = arith.addf %65, %66 : vector<8x512xf32>
    %68 = vector.extract_strided_slice %67 {offsets = [0, 0], sizes = [8, 384], strides = [1, 1]} : vector<8x512xf32> to vector<8x384xf32>
    %69 = arith.negf %68 : vector<8x384xf32>
    %70 = math.exp %69 : vector<8x384xf32>
    %cst_21 = arith.constant 1.000000e+00 : f32
    %71 = vector.broadcast %cst_21 : f32 to vector<8x384xf32>
    %72 = arith.addf %71, %70 : vector<8x384xf32>
    %73 = arith.divf %71, %72 : vector<8x384xf32>
    %74 = vector.extract_strided_slice %67 {offsets = [0, 384], sizes = [8, 128], strides = [1, 1]} : vector<8x512xf32> to vector<8x128xf32>
    %75 = math.tanh %74 : vector<8x128xf32>
    %76 = vector.extract_strided_slice %73 {offsets = [0, 128], sizes = [8, 128], strides = [1, 1]} : vector<8x384xf32> to vector<8x128xf32>
    %77 = arith.mulf %76, %57 : vector<8x128xf32>
    %78 = vector.extract_strided_slice %73 {offsets = [0, 0], sizes = [8, 128], strides = [1, 1]} : vector<8x384xf32> to vector<8x128xf32>
    %79 = arith.mulf %78, %75 : vector<8x128xf32>
    %80 = arith.addf %77, %79 : vector<8x128xf32>
    %81 = vector.extract_strided_slice %73 {offsets = [0, 256], sizes = [8, 128], strides = [1, 1]} : vector<8x384xf32> to vector<8x128xf32>
    %82 = math.tanh %80 : vector<8x128xf32>
    %83 = arith.mulf %81, %82 : vector<8x128xf32>
    %84 = arith.truncf %83 : vector<8x128xf32> to vector<8x128xbf16>
    %85 = arith.extui %9 : i1 to i32
    %c0_i32_22 = arith.constant 0 : i32
    %86 = arith.cmpi ne, %85, %c0_i32_22 : i32
    scf.if %86 {
      %c2 = arith.constant 2 : index
      %c0_40 = arith.constant 0 : index
      %c0_41 = arith.constant 0 : index
      %205 = vector.load %arg9[%c2, %c0_40, %c0_41] : memref<8x8x128xbf16, #tpu.memory_space<vmem>>, vector<1x8x128xbf16>
      %206 = vector.shape_cast %205 : vector<1x8x128xbf16> to vector<8x128xbf16>
      %207 = vector.shape_cast %84 : vector<8x128xbf16> to vector<1x8x128xbf16>
      tpu.vector_store %arg9[%c2, %c0_40, %c0_41], %207 {strides = array<i32>} : memref<8x8x128xbf16, #tpu.memory_space<vmem>>, vector<1x8x128xbf16>,
    } else {
    }
    %87 = vector.extract_strided_slice %17 {offsets = [3, 0, 0], sizes = [1, 8, 512], strides = [1, 1, 1]} : vector<8x8x512xf32> to vector<1x8x512xf32>
    %88 = vector.shape_cast %87 : vector<1x8x512xf32> to vector<8x512xf32>
    %cst_23 = arith.constant dense<0.000000e+00> : vector<8x512xf32>
    %89 = tpu.matmul %84, %6, %cst_23 {dimension_numbers = #tpu.dot_dimension_numbers<[1], [0], [0], [1], [0, 0, 1, 1], [], []>} : vector<8x128xbf16>, vector<128x512xbf16>, vector<8x512xf32> -> vector<8x512xf32>
    %90 = arith.addf %88, %89 : vector<8x512xf32>
    %91 = vector.extract_strided_slice %90 {offsets = [0, 0], sizes = [8, 384], strides = [1, 1]} : vector<8x512xf32> to vector<8x384xf32>
    %92 = arith.negf %91 : vector<8x384xf32>
    %93 = math.exp %92 : vector<8x384xf32>
    %cst_24 = arith.constant 1.000000e+00 : f32
    %94 = vector.broadcast %cst_24 : f32 to vector<8x384xf32>
    %95 = arith.addf %94, %93 : vector<8x384xf32>
    %96 = arith.divf %94, %95 : vector<8x384xf32>
    %97 = vector.extract_strided_slice %90 {offsets = [0, 384], sizes = [8, 128], strides = [1, 1]} : vector<8x512xf32> to vector<8x128xf32>
    %98 = math.tanh %97 : vector<8x128xf32>
    %99 = vector.extract_strided_slice %96 {offsets = [0, 128], sizes = [8, 128], strides = [1, 1]} : vector<8x384xf32> to vector<8x128xf32>
    %100 = arith.mulf %99, %80 : vector<8x128xf32>
    %101 = vector.extract_strided_slice %96 {offsets = [0, 0], sizes = [8, 128], strides = [1, 1]} : vector<8x384xf32> to vector<8x128xf32>
    %102 = arith.mulf %101, %98 : vector<8x128xf32>
    %103 = arith.addf %100, %102 : vector<8x128xf32>
    %104 = vector.extract_strided_slice %96 {offsets = [0, 256], sizes = [8, 128], strides = [1, 1]} : vector<8x384xf32> to vector<8x128xf32>
    %105 = math.tanh %103 : vector<8x128xf32>
    %106 = arith.mulf %104, %105 : vector<8x128xf32>
    %107 = arith.truncf %106 : vector<8x128xf32> to vector<8x128xbf16>
    %108 = arith.extui %9 : i1 to i32
    %c0_i32_25 = arith.constant 0 : i32
    %109 = arith.cmpi ne, %108, %c0_i32_25 : i32
    scf.if %109 {
      %c3 = arith.constant 3 : index
      %c0_40 = arith.constant 0 : index
      %c0_41 = arith.constant 0 : index
      %205 = vector.load %arg9[%c3, %c0_40, %c0_41] : memref<8x8x128xbf16, #tpu.memory_space<vmem>>, vector<1x8x128xbf16>
      %206 = vector.shape_cast %205 : vector<1x8x128xbf16> to vector<8x128xbf16>
      %207 = vector.shape_cast %107 : vector<8x128xbf16> to vector<1x8x128xbf16>
      tpu.vector_store %arg9[%c3, %c0_40, %c0_41], %207 {strides = array<i32>} : memref<8x8x128xbf16, #tpu.memory_space<vmem>>, vector<1x8x128xbf16>,
    } else {
    }
    %110 = vector.extract_strided_slice %17 {offsets = [4, 0, 0], sizes = [1, 8, 512], strides = [1, 1, 1]} : vector<8x8x512xf32> to vector<1x8x512xf32>
    %111 = vector.shape_cast %110 : vector<1x8x512xf32> to vector<8x512xf32>
    %cst_26 = arith.constant dense<0.000000e+00> : vector<8x512xf32>
    %112 = tpu.matmul %107, %6, %cst_26 {dimension_numbers = #tpu.dot_dimension_numbers<[1], [0], [0], [1], [0, 0, 1, 1], [], []>} : vector<8x128xbf16>, vector<128x512xbf16>, vector<8x512xf32> -> vector<8x512xf32>
    %113 = arith.addf %111, %112 : vector<8x512xf32>
    %114 = vector.extract_strided_slice %113 {offsets = [0, 0], sizes = [8, 384], strides = [1, 1]} : vector<8x512xf32> to vector<8x384xf32>
    %115 = arith.negf %114 : vector<8x384xf32>
    %116 = math.exp %115 : vector<8x384xf32>
    %cst_27 = arith.constant 1.000000e+00 : f32
    %117 = vector.broadcast %cst_27 : f32 to vector<8x384xf32>
    %118 = arith.addf %117, %116 : vector<8x384xf32>
    %119 = arith.divf %117, %118 : vector<8x384xf32>
    %120 = vector.extract_strided_slice %113 {offsets = [0, 384], sizes = [8, 128], strides = [1, 1]} : vector<8x512xf32> to vector<8x128xf32>
    %121 = math.tanh %120 : vector<8x128xf32>
    %122 = vector.extract_strided_slice %119 {offsets = [0, 128], sizes = [8, 128], strides = [1, 1]} : vector<8x384xf32> to vector<8x128xf32>
    %123 = arith.mulf %122, %103 : vector<8x128xf32>
    %124 = vector.extract_strided_slice %119 {offsets = [0, 0], sizes = [8, 128], strides = [1, 1]} : vector<8x384xf32> to vector<8x128xf32>
    %125 = arith.mulf %124, %121 : vector<8x128xf32>
    %126 = arith.addf %123, %125 : vector<8x128xf32>
    %127 = vector.extract_strided_slice %119 {offsets = [0, 256], sizes = [8, 128], strides = [1, 1]} : vector<8x384xf32> to vector<8x128xf32>
    %128 = math.tanh %126 : vector<8x128xf32>
    %129 = arith.mulf %127, %128 : vector<8x128xf32>
    %130 = arith.truncf %129 : vector<8x128xf32> to vector<8x128xbf16>
    %131 = arith.extui %9 : i1 to i32
    %c0_i32_28 = arith.constant 0 : i32
    %132 = arith.cmpi ne, %131, %c0_i32_28 : i32
    scf.if %132 {
      %c4 = arith.constant 4 : index
      %c0_40 = arith.constant 0 : index
      %c0_41 = arith.constant 0 : index
      %205 = vector.load %arg9[%c4, %c0_40, %c0_41] : memref<8x8x128xbf16, #tpu.memory_space<vmem>>, vector<1x8x128xbf16>
      %206 = vector.shape_cast %205 : vector<1x8x128xbf16> to vector<8x128xbf16>
      %207 = vector.shape_cast %130 : vector<8x128xbf16> to vector<1x8x128xbf16>
      tpu.vector_store %arg9[%c4, %c0_40, %c0_41], %207 {strides = array<i32>} : memref<8x8x128xbf16, #tpu.memory_space<vmem>>, vector<1x8x128xbf16>,
    } else {
    }
    %133 = vector.extract_strided_slice %17 {offsets = [5, 0, 0], sizes = [1, 8, 512], strides = [1, 1, 1]} : vector<8x8x512xf32> to vector<1x8x512xf32>
    %134 = vector.shape_cast %133 : vector<1x8x512xf32> to vector<8x512xf32>
    %cst_29 = arith.constant dense<0.000000e+00> : vector<8x512xf32>
    %135 = tpu.matmul %130, %6, %cst_29 {dimension_numbers = #tpu.dot_dimension_numbers<[1], [0], [0], [1], [0, 0, 1, 1], [], []>} : vector<8x128xbf16>, vector<128x512xbf16>, vector<8x512xf32> -> vector<8x512xf32>
    %136 = arith.addf %134, %135 : vector<8x512xf32>
    %137 = vector.extract_strided_slice %136 {offsets = [0, 0], sizes = [8, 384], strides = [1, 1]} : vector<8x512xf32> to vector<8x384xf32>
    %138 = arith.negf %137 : vector<8x384xf32>
    %139 = math.exp %138 : vector<8x384xf32>
    %cst_30 = arith.constant 1.000000e+00 : f32
    %140 = vector.broadcast %cst_30 : f32 to vector<8x384xf32>
    %141 = arith.addf %140, %139 : vector<8x384xf32>
    %142 = arith.divf %140, %141 : vector<8x384xf32>
    %143 = vector.extract_strided_slice %136 {offsets = [0, 384], sizes = [8, 128], strides = [1, 1]} : vector<8x512xf32> to vector<8x128xf32>
    %144 = math.tanh %143 : vector<8x128xf32>
    %145 = vector.extract_strided_slice %142 {offsets = [0, 128], sizes = [8, 128], strides = [1, 1]} : vector<8x384xf32> to vector<8x128xf32>
    %146 = arith.mulf %145, %126 : vector<8x128xf32>
    %147 = vector.extract_strided_slice %142 {offsets = [0, 0], sizes = [8, 128], strides = [1, 1]} : vector<8x384xf32> to vector<8x128xf32>
    %148 = arith.mulf %147, %144 : vector<8x128xf32>
    %149 = arith.addf %146, %148 : vector<8x128xf32>
    %150 = vector.extract_strided_slice %142 {offsets = [0, 256], sizes = [8, 128], strides = [1, 1]} : vector<8x384xf32> to vector<8x128xf32>
    %151 = math.tanh %149 : vector<8x128xf32>
    %152 = arith.mulf %150, %151 : vector<8x128xf32>
    %153 = arith.truncf %152 : vector<8x128xf32> to vector<8x128xbf16>
    %154 = arith.extui %9 : i1 to i32
    %c0_i32_31 = arith.constant 0 : i32
    %155 = arith.cmpi ne, %154, %c0_i32_31 : i32
    scf.if %155 {
      %c5 = arith.constant 5 : index
      %c0_40 = arith.constant 0 : index
      %c0_41 = arith.constant 0 : index
      %205 = vector.load %arg9[%c5, %c0_40, %c0_41] : memref<8x8x128xbf16, #tpu.memory_space<vmem>>, vector<1x8x128xbf16>
      %206 = vector.shape_cast %205 : vector<1x8x128xbf16> to vector<8x128xbf16>
      %207 = vector.shape_cast %153 : vector<8x128xbf16> to vector<1x8x128xbf16>
      tpu.vector_store %arg9[%c5, %c0_40, %c0_41], %207 {strides = array<i32>} : memref<8x8x128xbf16, #tpu.memory_space<vmem>>, vector<1x8x128xbf16>,
    } else {
    }
    %156 = vector.extract_strided_slice %17 {offsets = [6, 0, 0], sizes = [1, 8, 512], strides = [1, 1, 1]} : vector<8x8x512xf32> to vector<1x8x512xf32>
    %157 = vector.shape_cast %156 : vector<1x8x512xf32> to vector<8x512xf32>
    %cst_32 = arith.constant dense<0.000000e+00> : vector<8x512xf32>
    %158 = tpu.matmul %153, %6, %cst_32 {dimension_numbers = #tpu.dot_dimension_numbers<[1], [0], [0], [1], [0, 0, 1, 1], [], []>} : vector<8x128xbf16>, vector<128x512xbf16>, vector<8x512xf32> -> vector<8x512xf32>
    %159 = arith.addf %157, %158 : vector<8x512xf32>
    %160 = vector.extract_strided_slice %159 {offsets = [0, 0], sizes = [8, 384], strides = [1, 1]} : vector<8x512xf32> to vector<8x384xf32>
    %161 = arith.negf %160 : vector<8x384xf32>
    %162 = math.exp %161 : vector<8x384xf32>
    %cst_33 = arith.constant 1.000000e+00 : f32
    %163 = vector.broadcast %cst_33 : f32 to vector<8x384xf32>
    %164 = arith.addf %163, %162 : vector<8x384xf32>
    %165 = arith.divf %163, %164 : vector<8x384xf32>
    %166 = vector.extract_strided_slice %159 {offsets = [0, 384], sizes = [8, 128], strides = [1, 1]} : vector<8x512xf32> to vector<8x128xf32>
    %167 = math.tanh %166 : vector<8x128xf32>
    %168 = vector.extract_strided_slice %165 {offsets = [0, 128], sizes = [8, 128], strides = [1, 1]} : vector<8x384xf32> to vector<8x128xf32>
    %169 = arith.mulf %168, %149 : vector<8x128xf32>
    %170 = vector.extract_strided_slice %165 {offsets = [0, 0], sizes = [8, 128], strides = [1, 1]} : vector<8x384xf32> to vector<8x128xf32>
    %171 = arith.mulf %170, %167 : vector<8x128xf32>
    %172 = arith.addf %169, %171 : vector<8x128xf32>
    %173 = vector.extract_strided_slice %165 {offsets = [0, 256], sizes = [8, 128], strides = [1, 1]} : vector<8x384xf32> to vector<8x128xf32>
    %174 = math.tanh %172 : vector<8x128xf32>
    %175 = arith.mulf %173, %174 : vector<8x128xf32>
    %176 = arith.truncf %175 : vector<8x128xf32> to vector<8x128xbf16>
    %177 = arith.extui %9 : i1 to i32
    %c0_i32_34 = arith.constant 0 : i32
    %178 = arith.cmpi ne, %177, %c0_i32_34 : i32
    scf.if %178 {
      %c6 = arith.constant 6 : index
      %c0_40 = arith.constant 0 : index
      %c0_41 = arith.constant 0 : index
      %205 = vector.load %arg9[%c6, %c0_40, %c0_41] : memref<8x8x128xbf16, #tpu.memory_space<vmem>>, vector<1x8x128xbf16>
      %206 = vector.shape_cast %205 : vector<1x8x128xbf16> to vector<8x128xbf16>
      %207 = vector.shape_cast %176 : vector<8x128xbf16> to vector<1x8x128xbf16>
      tpu.vector_store %arg9[%c6, %c0_40, %c0_41], %207 {strides = array<i32>} : memref<8x8x128xbf16, #tpu.memory_space<vmem>>, vector<1x8x128xbf16>,
    } else {
    }
    %179 = vector.extract_strided_slice %17 {offsets = [7, 0, 0], sizes = [1, 8, 512], strides = [1, 1, 1]} : vector<8x8x512xf32> to vector<1x8x512xf32>
    %180 = vector.shape_cast %179 : vector<1x8x512xf32> to vector<8x512xf32>
    %cst_35 = arith.constant dense<0.000000e+00> : vector<8x512xf32>
    %181 = tpu.matmul %176, %6, %cst_35 {dimension_numbers = #tpu.dot_dimension_numbers<[1], [0], [0], [1], [0, 0, 1, 1], [], []>} : vector<8x128xbf16>, vector<128x512xbf16>, vector<8x512xf32> -> vector<8x512xf32>
    %182 = arith.addf %180, %181 : vector<8x512xf32>
    %183 = vector.extract_strided_slice %182 {offsets = [0, 0], sizes = [8, 384], strides = [1, 1]} : vector<8x512xf32> to vector<8x384xf32>
    %184 = arith.negf %183 : vector<8x384xf32>
    %185 = math.exp %184 : vector<8x384xf32>
    %cst_36 = arith.constant 1.000000e+00 : f32
    %186 = vector.broadcast %cst_36 : f32 to vector<8x384xf32>
    %187 = arith.addf %186, %185 : vector<8x384xf32>
    %188 = arith.divf %186, %187 : vector<8x384xf32>
    %189 = vector.extract_strided_slice %182 {offsets = [0, 384], sizes = [8, 128], strides = [1, 1]} : vector<8x512xf32> to vector<8x128xf32>
    %190 = math.tanh %189 : vector<8x128xf32>
    %191 = vector.extract_strided_slice %188 {offsets = [0, 128], sizes = [8, 128], strides = [1, 1]} : vector<8x384xf32> to vector<8x128xf32>
    %192 = arith.mulf %191, %172 : vector<8x128xf32>
    %193 = vector.extract_strided_slice %188 {offsets = [0, 0], sizes = [8, 128], strides = [1, 1]} : vector<8x384xf32> to vector<8x128xf32>
    %194 = arith.mulf %193, %190 : vector<8x128xf32>
    %195 = arith.addf %192, %194 : vector<8x128xf32>
    %196 = vector.extract_strided_slice %188 {offsets = [0, 256], sizes = [8, 128], strides = [1, 1]} : vector<8x384xf32> to vector<8x128xf32>
    %197 = math.tanh %195 : vector<8x128xf32>
    %198 = arith.mulf %196, %197 : vector<8x128xf32>
    %199 = arith.truncf %198 : vector<8x128xf32> to vector<8x128xbf16>
    %200 = arith.extui %9 : i1 to i32
    %c0_i32_37 = arith.constant 0 : i32
    %201 = arith.cmpi ne, %200, %c0_i32_37 : i32
    scf.if %201 {
      %c7 = arith.constant 7 : index
      %c0_40 = arith.constant 0 : index
      %c0_41 = arith.constant 0 : index
      %205 = vector.load %arg9[%c7, %c0_40, %c0_41] : memref<8x8x128xbf16, #tpu.memory_space<vmem>>, vector<1x8x128xbf16>
      %206 = vector.shape_cast %205 : vector<1x8x128xbf16> to vector<8x128xbf16>
      %207 = vector.shape_cast %199 : vector<8x128xbf16> to vector<1x8x128xbf16>
      tpu.vector_store %arg9[%c7, %c0_40, %c0_41], %207 {strides = array<i32>} : memref<8x8x128xbf16, #tpu.memory_space<vmem>>, vector<1x8x128xbf16>,
    } else {
    }
    %c1_i32_38 = arith.constant 1 : i32
    %202 = arith.cmpi eq, %arg1, %c1_i32_38 : i32
    %203 = arith.extui %202 : i1 to i32
    %c0_i32_39 = arith.constant 0 : i32
    %204 = arith.cmpi ne, %203, %c0_i32_39 : i32
    scf.if %204 {
      %c0_40 = arith.constant 0 : index
      %c0_41 = arith.constant 0 : index
      %205 = vector.load %arg6[%c0_40, %c0_41] : memref<128x128xbf16, #tpu.memory_space<vmem>>, vector<128x128xbf16>
      %cst_42 = arith.constant dense<0.000000e+00> : vector<8x128xf32>
      %206 = tpu.matmul %199, %205, %cst_42 {dimension_numbers = #tpu.dot_dimension_numbers<[1], [0], [0], [1], [0, 0, 1, 1], [], []>} : vector<8x128xbf16>, vector<128x128xbf16>, vector<8x128xf32> -> vector<8x128xf32>
      %c0_43 = arith.constant 0 : index
      %c0_44 = arith.constant 0 : index
      %207 = vector.load %arg7[%c0_43, %c0_44] : memref<1x128xf32, #tpu.memory_space<vmem>>, vector<1x128xf32>
      %208 = vector.broadcast %207 : vector<1x128xf32> to vector<8x128xf32>
      %209 = arith.addf %206, %208 : vector<8x128xf32>
      %c0_45 = arith.constant 0 : index
      %c0_46 = arith.constant 0 : index
      %210 = vector.load %arg8[%c0_45, %c0_46] : memref<8x128xf32, #tpu.memory_space<vmem>>, vector<8x128xf32>
      tpu.vector_store %arg8[%c0_45, %c0_46], %209 {strides = array<i32>} : memref<8x128xf32, #tpu.memory_space<vmem>>, vector<8x128xf32>,
    } else {
    }
    return
  }
  func.func @transform_0(%arg0: i32, %arg1: i32) -> (i32, i32, i32) {
    %c0_i32 = arith.constant 0 : i32
    %c0_i32_0 = arith.constant 0 : i32
    %c0_i32_1 = arith.constant 0 : i32
    return %c0_i32, %arg0, %c0_i32_0 : i32, i32, i32
  }
  func.func @transform_1(%arg0: i32, %arg1: i32) -> (i32, i32, i32) {
    %c0_i32 = arith.constant 0 : i32
    %c0_i32_0 = arith.constant 0 : i32
    %c0_i32_1 = arith.constant 0 : i32
    return %arg1, %c0_i32, %c0_i32_0 : i32, i32, i32
  }
  func.func @transform_2(%arg0: i32, %arg1: i32) -> (i32, i32, i32) {
    %c0_i32 = arith.constant 0 : i32
    %c0_i32_0 = arith.constant 0 : i32
    %c0_i32_1 = arith.constant 0 : i32
    return %arg1, %c0_i32, %c0_i32_0 : i32, i32, i32
  }
  func.func @transform_3(%arg0: i32, %arg1: i32) -> (i32, i32, i32) {
    %c0_i32 = arith.constant 0 : i32
    %c0_i32_0 = arith.constant 0 : i32
    %c0_i32_1 = arith.constant 0 : i32
    return %arg1, %c0_i32, %c0_i32_0 : i32, i32, i32
  }
  func.func @transform_4(%arg0: i32, %arg1: i32) -> (i32, i32) {
    %c0_i32 = arith.constant 0 : i32
    %c0_i32_0 = arith.constant 0 : i32
    %c0_i32_1 = arith.constant 0 : i32
    return %c0_i32, %c0_i32_0 : i32, i32
  }
  func.func @transform_5(%arg0: i32, %arg1: i32) -> (i32, i32) {
    %c0_i32 = arith.constant 0 : i32
    %c0_i32_0 = arith.constant 0 : i32
    %c0_i32_1 = arith.constant 0 : i32
    return %c0_i32, %c0_i32_0 : i32, i32
  }
  func.func @transform_6(%arg0: i32, %arg1: i32) -> (i32, i32) {
    %c0_i32 = arith.constant 0 : i32
    %c0_i32_0 = arith.constant 0 : i32
    return %arg0, %c0_i32 : i32, i32
  }
}

</mosaic_0001>

<llo_original>
// kernel: rnn_model_forward.1
$region0: #{rnn_model_forward.1}
  #allocation0 [shape = 'u32[]', space=smem, size = 0x4, offset = 0x4, fixed_abs, tag = 'smem constant byte address 0x4 - core index']
  #allocation1 [shape = 'u32[72,128]{1,0:T(1,128)}', space=vmem, size = 0x9000, scoped, tag = 'internal scratch']
  #allocation2 [shape = 'bf16[8,8,128]{2,1,0:T(8,128)(2,1)}', space=vmem, size = 0x4000, scoped, tag = 'scratch operand']
  %s0 = inlined_call_operand.vmem [shape: bf16[8,8,128], index: 0, kind: input, shape index: {}]
  %s1 = inlined_call_operand.hbm [shape: bf16[2,128,512], index: 1, kind: input, shape index: {}]
  %s2 = inlined_call_operand.hbm [shape: bf16[2,128,512], index: 2, kind: input, shape index: {}]
  %s3 = inlined_call_operand.hbm [shape: f32[2,1,512], index: 3, kind: input, shape index: {}]
  %s4 = inlined_call_operand.vmem [shape: bf16[128,128], index: 4, kind: input, shape index: {}]
  %s5 = inlined_call_operand.vmem [shape: f32[1,128], index: 5, kind: input, shape index: {}]
  %s6 = inlined_call_operand.vmem [shape: f32[8,128], index: 6, kind: output, shape index: {}]
  %s7 = sld [smem:[#allocation0]]
  $region109: #{rnn_model_forward.1} parent=0
    _
  %s9 = ssub.s32 1, %s7
  %s10 = scalar_select 0, %s9, %s7
  $region1: #{rnn_model_forward.1} parent=0
    #allocation3 [shape = 'u8[262144]{0}', space=vmem, size = 0x40000, scoped, tag = 'input window, operand 1']
    #allocation4 [shape = 's32[2]{0}', space=sflag, size = 0x8, scoped, tag = 'scoped memory for rnn_model_forward.1']
    #allocation5 [shape = 'u8[262144]{0}', space=vmem, size = 0x40000, scoped, tag = 'input window, operand 2']
    #allocation6 [shape = 's32[2]{0}', space=sflag, size = 0x8, scoped, tag = 'scoped memory for rnn_model_forward.1']
    #allocation7 [shape = 'u8[4096]{0}', space=vmem, size = 0x1000, scoped, tag = 'input window, operand 3']
    %11 = vsyncpa [#allocation4], 0
    %s12 = scalar_lea.sflag [#allocation4], 1
    %13 = vsyncpa %s12, 0
    %14 = vsyncpa [#allocation6], 0
    %s15 = scalar_lea.sflag [#allocation6], 1
    %16 = vsyncpa %s15, 0
    loop: start=0, step=1, limit=4
    $region2: #{rnn_model_forward.1} parent=1 // loop_pre_header
      _
    $region3: #{rnn_model_forward.1} parent=1 // loop_header
      %s18 = sphi 0, %s22
      %p19 = scmp.ge.s32.totalorder %s18, 4
      %s25 = sphi 0, %s37
      %s26 = sphi 0, %s33
      %s27 = sphi 0, %s25
      %s28 = sphi 0, %s26
      %s29 = sphi 0, %s27
      %s30 = sphi 0, %s28
      %s40 = sphi 0, %s42
      %s43 = sphi 0, %s40
      %s44 = sphi 0, %s43
      %s60 = sphi 0, %s44
      %s66 = sphi 0, %s68
      %s69 = sphi 0, %s66
      %s70 = sphi 0, %s69
      %s86 = sphi 0, %s70
      %s92 = sphi 0, %s94
      %s95 = sphi 0, %s92
      %s96 = sphi 0, %s95
      %s112 = sphi 0, %s96
      %s118 = sphi 0, %s120
      %s121 = sphi 0, %s118
      %s122 = sphi 0, %s121
      %s138 = sphi 0, %s122
      %s142 = sphi 0, %s142
      %s144 = sphi 0, %s142
      %s145 = sphi 0, %s144
      %s159 = sphi 0, %s145
      %s163 = sphi 0, %s163
      %s165 = sphi 0, %s163
      %s166 = sphi 0, %s165
      %s180 = sphi 0, %s166
      %s186 = sphi 0, %s188
      %s189 = sphi 0, %s186
      %s190 = sphi 0, %s189
      %s206 = sphi 0, %s190
    $region4: #{rnn_model_forward.1} parent=1 // loop_header_branch
      %21 = sbr.rel (%p19) target = $region8
    $region5: #{rnn_model_forward.1} parent=1 // loop_body
      %s23 = ssub.s32 %s18, 1
      %s24 = ssub.s32 %s18, 2
      %s31 = sadd.s32 1, %s26
      %p32 = scmp.ge.s32.totalorder %s31, 2
      %s33 = scalar_select %p32, 0, %s31
      %s34 = sadd.s32 1, %s25
      %s35 = scalar_select %p32, %s34, %s25
      %p36 = scmp.ge.s32.totalorder %s35, 1
      %s37 = scalar_select %p36, 0, %s35
      %s38 = ssub.s32 %s25, %s37
      %p39 = scmp.eq.s32.totalorder %s38, 0
      %s41 = sadd.s32 %s40, 1
      %s42 = scalar_select %p39, %s40, %s41
      %p45 = pneg %p39
      %p46 = scmp.eq.s32.totalorder %s18, 1
      %p47 = por %p45, %p46
      %p48 = scmp.ne.s32.totalorder %s40, %s43
      %p49 = scmp.eq.s32.totalorder %s18, 0
      %p50 = por %p48, %p49
      %p51 = scmp.ne.s32.totalorder %s40, %s43
      %p52 = scmp.eq.s32.totalorder %s23, 1
      %p53 = por %p51, %p52
      %p54 = scmp.ne.s32.totalorder %s43, %s44
      %p55 = scmp.eq.s32.totalorder %s23, 0
      %p56 = por %p54, %p55
      %p57 = scmp.ne.s32.totalorder %s43, %s44
      %p58 = scmp.eq.s32.totalorder %s24, 1
      %p59 = por %p57, %p58
      %p61 = scmp.ne.s32.totalorder %s44, %s60
      %p62 = scmp.eq.s32.totalorder %s24, 0
      %p63 = por %p61, %p62
      %s64 = ssub.s32 %s26, %s33
      %p65 = scmp.eq.s32.totalorder %s64, 0
      %s67 = sadd.s32 %s66, 1
      %s68 = scalar_select %p65, %s66, %s67
      %p71 = pneg %p65
      %p72 = scmp.eq.s32.totalorder %s18, 1
      %p73 = por %p71, %p72
      %p74 = scmp.ne.s32.totalorder %s66, %s69
      %p75 = scmp.eq.s32.totalorder %s18, 0
      %p76 = por %p74, %p75
      %p77 = scmp.ne.s32.totalorder %s66, %s69
      %p78 = scmp.eq.s32.totalorder %s23, 1
      %p79 = por %p77, %p78
      %p80 = scmp.ne.s32.totalorder %s69, %s70
      %p81 = scmp.eq.s32.totalorder %s23, 0
      %p82 = por %p80, %p81
      %p83 = scmp.ne.s32.totalorder %s69, %s70
      %p84 = scmp.eq.s32.totalorder %s24, 1
      %p85 = por %p83, %p84
      %p87 = scmp.ne.s32.totalorder %s70, %s86
      %p88 = scmp.eq.s32.totalorder %s24, 0
      %p89 = por %p87, %p88
      %s90 = ssub.s32 %s26, %s33
      %p91 = scmp.eq.s32.totalorder %s90, 0
      %s93 = sadd.s32 %s92, 1
      %s94 = scalar_select %p91, %s92, %s93
      %p97 = pneg %p91
      %p98 = scmp.eq.s32.totalorder %s18, 1
      %p99 = por %p97, %p98
      %p100 = scmp.ne.s32.totalorder %s92, %s95
      %p101 = scmp.eq.s32.totalorder %s18, 0
      %p102 = por %p100, %p101
      %p103 = scmp.ne.s32.totalorder %s92, %s95
      %p104 = scmp.eq.s32.totalorder %s23, 1
      %p105 = por %p103, %p104
      %p106 = scmp.ne.s32.totalorder %s95, %s96
      %p107 = scmp.eq.s32.totalorder %s23, 0
      %p108 = por %p106, %p107
      %p109 = scmp.ne.s32.totalorder %s95, %s96
      %p110 = scmp.eq.s32.totalorder %s24, 1
      %p111 = por %p109, %p110
      %p113 = scmp.ne.s32.totalorder %s96, %s112
      %p114 = scmp.eq.s32.totalorder %s24, 0
      %p115 = por %p113, %p114
      %s116 = ssub.s32 %s26, %s33
      %p117 = scmp.eq.s32.totalorder %s116, 0
      %s119 = sadd.s32 %s118, 1
      %s120 = scalar_select %p117, %s118, %s119
      %p123 = pneg %p117
      %p124 = scmp.eq.s32.totalorder %s18, 1
      %p125 = por %p123, %p124
      %p126 = scmp.ne.s32.totalorder %s118, %s121
      %p127 = scmp.eq.s32.totalorder %s18, 0
      %p128 = por %p126, %p127
      %p129 = scmp.ne.s32.totalorder %s118, %s121
      %p130 = scmp.eq.s32.totalorder %s23, 1
      %p131 = por %p129, %p130
      %p132 = scmp.ne.s32.totalorder %s121, %s122
      %p133 = scmp.eq.s32.totalorder %s23, 0
      %p134 = por %p132, %p133
      %p135 = scmp.ne.s32.totalorder %s121, %s122
      %p136 = scmp.eq.s32.totalorder %s24, 1
      %p137 = por %p135, %p136
      %p139 = scmp.ne.s32.totalorder %s122, %s138
      %p140 = scmp.eq.s32.totalorder %s24, 0
      %p141 = por %p139, %p140
      %s143 = sadd.s32 %s142, 1
      %p146 = scmp.eq.s32.totalorder %s18, 1
      %p147 = scmp.ne.s32.totalorder %s142, %s144
      %p148 = scmp.eq.s32.totalorder %s18, 0
      %p149 = por %p147, %p148
      %p150 = scmp.ne.s32.totalorder %s142, %s144
      %p151 = scmp.eq.s32.totalorder %s23, 1
      %p152 = por %p150, %p151
      %p153 = scmp.ne.s32.totalorder %s144, %s145
      %p154 = scmp.eq.s32.totalorder %s23, 0
      %p155 = por %p153, %p154
      %p156 = scmp.ne.s32.totalorder %s144, %s145
      %p157 = scmp.eq.s32.totalorder %s24, 1
      %p158 = por %p156, %p157
      %p160 = scmp.ne.s32.totalorder %s145, %s159
      %p161 = scmp.eq.s32.totalorder %s24, 0
      %p162 = por %p160, %p161
      %s164 = sadd.s32 %s163, 1
      %p167 = scmp.eq.s32.totalorder %s18, 1
      %p168 = scmp.ne.s32.totalorder %s163, %s165
      %p169 = scmp.eq.s32.totalorder %s18, 0
      %p170 = por %p168, %p169
      %p171 = scmp.ne.s32.totalorder %s163, %s165
      %p172 = scmp.eq.s32.totalorder %s23, 1
      %p173 = por %p171, %p172
      %p174 = scmp.ne.s32.totalorder %s165, %s166
      %p175 = scmp.eq.s32.totalorder %s23, 0
      %p176 = por %p174, %p175
      %p177 = scmp.ne.s32.totalorder %s165, %s166
      %p178 = scmp.eq.s32.totalorder %s24, 1
      %p179 = por %p177, %p178
      %p181 = scmp.ne.s32.totalorder %s166, %s180
      %p182 = scmp.eq.s32.totalorder %s24, 0
      %p183 = por %p181, %p182
      %s184 = ssub.s32 %s25, %s37
      %p185 = scmp.eq.s32.totalorder %s184, 0
      %s187 = sadd.s32 %s186, 1
      %s188 = scalar_select %p185, %s186, %s187
      %p191 = pneg %p185
      %p192 = scmp.eq.s32.totalorder %s18, 1
      %p193 = por %p191, %p192
      %p194 = scmp.ne.s32.totalorder %s186, %s189
      %p195 = scmp.eq.s32.totalorder %s18, 0
      %p196 = por %p194, %p195
      %p197 = scmp.ne.s32.totalorder %s186, %s189
      %p198 = scmp.eq.s32.totalorder %s23, 1
      %p199 = por %p197, %p198
      %p200 = scmp.ne.s32.totalorder %s189, %s190
      %p201 = scmp.eq.s32.totalorder %s23, 0
      %p202 = por %p200, %p201
      %p203 = scmp.ne.s32.totalorder %s189, %s190
      %p204 = scmp.eq.s32.totalorder %s24, 1
      %p205 = por %p203, %p204
      %p207 = scmp.ne.s32.totalorder %s190, %s206
      %p208 = scmp.eq.s32.totalorder %s24, 0
      %p209 = por %p207, %p208
      %p210 = scmp.le.s32.totalorder 1, %s18
      %p211 = scmp.lt.s32.totalorder %s18, 3
      %p212 = pnand %p210, %p211
      %p213 = pneg %p212
      // Predicated region
      $region9: #{rnn_model_forward.1} parent=5 // pred_check
        _
      $region10: #{rnn_model_forward.1} parent=5 // pred_check_branch
        %215 = sbr.rel (%p212) target = $region12
      $region11: #{rnn_model_forward.1} parent=5 // pred_region
        %s216 = ssub.s32 %s18, 1
        // Predicated region
        $region13: #{rnn_model_forward.1} parent=11 // pred_check
          %p217 = pneg %p56
        $region14: #{rnn_model_forward.1} parent=11 // pred_check_branch
          %219 = sbr.rel (%p217) target = $region16
        $region15: #{rnn_model_forward.1} parent=11 // pred_region
          %p220 = scmp.lt.s32.totalorder %s27, 0
          %s221 = scalar_select %p220, %s27, 0
          %s222 = smul.addr %s221, 4
          %s223 = scalar_lea.vmem %s0, %s222
        $region16: #{rnn_model_forward.1} parent=11 // pred_fallthru
          _
        // Predicated region
        $region17: #{rnn_model_forward.1} parent=11 // pred_check
          %p224 = pneg %p155
        $region18: #{rnn_model_forward.1} parent=11 // pred_check_branch
          %226 = sbr.rel (%p224) target = $region20
        $region19: #{rnn_model_forward.1} parent=11 // pred_region
          _
        $region20: #{rnn_model_forward.1} parent=11 // pred_fallthru
          _
        // Predicated region
        $region21: #{rnn_model_forward.1} parent=11 // pred_check
          %p227 = pneg %p176
        $region22: #{rnn_model_forward.1} parent=11 // pred_check_branch
          %229 = sbr.rel (%p227) target = $region24
        $region23: #{rnn_model_forward.1} parent=11 // pred_region
          _
        $region24: #{rnn_model_forward.1} parent=11 // pred_fallthru
          _
      $region12: #{rnn_model_forward.1} parent=5 // pred_fallthru
        _
      %p230 = scmp.lt.s32.totalorder %s18, 2
      // Predicated region
      $region25: #{rnn_model_forward.1} parent=5 // pred_check
        %p231 = pneg %p230
      $region26: #{rnn_model_forward.1} parent=5 // pred_check_branch
        %233 = sbr.rel (%p231) target = $region28
      $region27: #{rnn_model_forward.1} parent=5 // pred_region
        // Predicated region
        $region29: #{rnn_model_forward.1} parent=27 // pred_check
          %p234 = pneg %p76
        $region30: #{rnn_model_forward.1} parent=27 // pred_check_branch
          %236 = sbr.rel (%p234) target = $region32
        $region31: #{rnn_model_forward.1} parent=27 // pred_region
          %s237 = sand.u32 %s66, 1
          %s238 = scalar_lea.sflag [#allocation4], %s237
          %s239 = sand.u32 %s66, 1
          %s240 = smul.addr %s239, 256
          %s241 = scalar_lea.vmem [#allocation3], %s240
          %243 = vsyncadd %s238, 0
          %s244 = smul.addr %s26, 64
          %s245 = smul.addr %s244, 4
          %s246 = scalar_lea.hbm %s1, %s245
          %s247 = sshll.u32 %s246, 4
          %s248 = int_to_ptr.hbm [resolvable:$true] %s247
          %s249 = sshll.u32 %s241, 4
          %s250 = int_to_ptr.vmem [resolvable:$true] %s249
          %255 = dma.hbm_to_vmem [thread:$0]  %s248, 4096, %s250, %s238, 256, 256, 16
        $region32: #{rnn_model_forward.1} parent=27 // pred_fallthru
          _
        // Predicated region
        $region33: #{rnn_model_forward.1} parent=27 // pred_check
          %p256 = pneg %p102
        $region34: #{rnn_model_forward.1} parent=27 // pred_check_branch
          %258 = sbr.rel (%p256) target = $region36
        $region35: #{rnn_model_forward.1} parent=27 // pred_region
          %s259 = sand.u32 %s18, 1
          %s260 = scalar_lea.sflag [#allocation6], %s259
          %s261 = sand.u32 %s92, 1
          %s262 = smul.addr %s261, 256
          %s263 = scalar_lea.vmem [#allocation5], %s262
          %265 = vsyncadd %s260, 0
          %s266 = smul.addr %s26, 64
          %s267 = smul.addr %s266, 4
          %s268 = scalar_lea.hbm %s2, %s267
          %s269 = sshll.u32 %s268, 4
          %s270 = int_to_ptr.hbm [resolvable:$true] %s269
          %s271 = sshll.u32 %s263, 4
          %s272 = int_to_ptr.vmem [resolvable:$true] %s271
          %277 = dma.hbm_to_vmem [thread:$0]  %s270, 4096, %s272, %s260, 256, 256, 16
        $region36: #{rnn_model_forward.1} parent=27 // pred_fallthru
          _
        // Predicated region
        $region37: #{rnn_model_forward.1} parent=27 // pred_check
          %p278 = pneg %p128
        $region38: #{rnn_model_forward.1} parent=27 // pred_check_branch
          %280 = sbr.rel (%p278) target = $region40
        $region39: #{rnn_model_forward.1} parent=27 // pred_region
          %s281 = sand.u32 %s18, 1
          %s282 = scalar_lea.sflag [#allocation6], %s281
          %s283 = sand.u32 %s118, 1
          %s284 = smul.addr %s283, 4
          %s285 = scalar_lea.vmem [#allocation7], %s284
          %287 = vsyncadd %s282, 0
          %s288 = smul.addr %s26, 4
          %s289 = scalar_lea.hbm %s3, %s288
          %s291 = sshll.u32 %s289, 4
          %s292 = int_to_ptr.hbm [resolvable:$true] %s291
          %s293 = sshll.u32 %s285, 4
          %s294 = int_to_ptr.vmem [resolvable:$true] %s293
          %296 = dma.hbm_to_vmem [thread:$0]  %s292, 64, %s294, %s282
        $region40: #{rnn_model_forward.1} parent=27 // pred_fallthru
          _
      $region28: #{rnn_model_forward.1} parent=5 // pred_fallthru
        _
      %p297 = scmp.le.s32.totalorder 1, %s18
      %p298 = scmp.lt.s32.totalorder %s18, 3
      %p299 = pnand %p297, %p298
      %p300 = pneg %p299
      // Predicated region
      $region41: #{rnn_model_forward.1} parent=5 // pred_check
        _
      $region42: #{rnn_model_forward.1} parent=5 // pred_check_branch
        %302 = sbr.rel (%p299) target = $region44
      $region43: #{rnn_model_forward.1} parent=5 // pred_region
        %s303 = ssub.s32 %s18, 1
        %s304 = sand.u32 %s69, 1
        %s305 = scalar_lea.sflag [#allocation4], %s304
        %s306 = sand.u32 %s69, 1
        %s307 = smul.addr %s306, 256
        %s308 = scalar_lea.vmem [#allocation3], %s307
        // Predicated region
        $region45: #{rnn_model_forward.1} parent=43 // pred_check
          %p309 = pneg %p82
        $region46: #{rnn_model_forward.1} parent=43 // pred_check_branch
          %311 = sbr.rel (%p309) target = $region48
        $region47: #{rnn_model_forward.1} parent=43 // pred_region
          %313 = dma.done %s305, 4096
        $region48: #{rnn_model_forward.1} parent=43 // pred_fallthru
          _
        %s314 = sand.u32 %s23, 1
        %s315 = scalar_lea.sflag [#allocation6], %s314
        %s316 = sand.u32 %s95, 1
        %s317 = smul.addr %s316, 256
        %s318 = scalar_lea.vmem [#allocation5], %s317
        // Predicated region
        $region49: #{rnn_model_forward.1} parent=43 // pred_check
          %p319 = pneg %p108
        $region50: #{rnn_model_forward.1} parent=43 // pred_check_branch
          %321 = sbr.rel (%p319) target = $region52
        $region51: #{rnn_model_forward.1} parent=43 // pred_region
          %323 = dma.done %s315, 4096
        $region52: #{rnn_model_forward.1} parent=43 // pred_fallthru
          _
        %s324 = sand.u32 %s23, 1
        %s325 = scalar_lea.sflag [#allocation6], %s324
        %s326 = sand.u32 %s121, 1
        %s327 = smul.addr %s326, 4
        %s328 = scalar_lea.vmem [#allocation7], %s327
        // Predicated region
        $region53: #{rnn_model_forward.1} parent=43 // pred_check
          %p329 = pneg %p134
        $region54: #{rnn_model_forward.1} parent=43 // pred_check_branch
          %331 = sbr.rel (%p329) target = $region56
        $region55: #{rnn_model_forward.1} parent=43 // pred_region
          %333 = dma.done %s325, 64
        $region56: #{rnn_model_forward.1} parent=43 // pred_fallthru
          _
        %p334 = scmp.lt.s32.totalorder %s27, 0
        %s335 = scalar_select %p334, %s27, 0
        %s336 = smul.addr %s335, 4
        %s337 = scalar_lea.vmem %s0, %s336
        %p338 = pneg %p56
        %p339 = pneg %p53
        %s340 = sand.u32 %s69, 1
        %s341 = scalar_lea.sflag [#allocation4], %s340
        %s342 = sand.u32 %s69, 1
        %s343 = smul.addr %s342, 256
        %s344 = scalar_lea.vmem [#allocation3], %s343
        %p345 = pneg %p82
        %p346 = pneg %p79
        %s347 = sand.u32 %s23, 1
        %s348 = scalar_lea.sflag [#allocation6], %s347
        %s349 = sand.u32 %s95, 1
        %s350 = smul.addr %s349, 256
        %s351 = scalar_lea.vmem [#allocation5], %s350
        %p352 = pneg %p108
        %p353 = pneg %p105
        %s354 = sand.u32 %s23, 1
        %s355 = scalar_lea.sflag [#allocation6], %s354
        %s356 = sand.u32 %s121, 1
        %s357 = smul.addr %s356, 4
        %s358 = scalar_lea.vmem [#allocation7], %s357
        %p359 = pneg %p134
        %p360 = pneg %p131
        %p361 = pneg %p155
        %p362 = pneg %p152
        %p363 = pneg %p176
        %p364 = pneg %p173
        %p365 = pneg %p202
        %p366 = pneg %p199
        %p367 = scmp.lt.s32.totalorder %s27, 0
        %s368 = scalar_select %p367, %s27, 0
        %s369 = smul.addr %s368, 8
        %s370 = scalar_lea.vmem %s6, %s369
        %p371 = scmp.lt.s32.totalorder %s27, 0
        %s372 = scalar_select %p371, %s27, 0
        %s373 = smul.addr %s372, 4
        %s374 = scalar_lea.vmem %s0, %s373
        %p375 = scmp.lt.s32.totalorder %s27, 0
        %s376 = scalar_select %p375, %s27, 0
        %s377 = smul.addr %s376, 8
        %s378 = scalar_lea.vmem %s6, %s377
        %p380 = scmp.eq.s32.totalorder %s28, 0
        // Predicated region
        $region57: #{rnn_model_forward.1} parent=43 // pred_check
          %p381 = pneg %p380
        $region58: #{rnn_model_forward.1} parent=43 // pred_check_branch
          %383 = sbr.rel (%p381) target = $region60
        $region59: #{rnn_model_forward.1} parent=43 // pred_region
          %v384 = vld [vmem:[%s374] sm:$0xf]
          %v385 = vld [vmem:[%s374 + $0x4] sm:$0xf]
          %v386 = vld [vmem:[%s374 + $0x8] sm:$0xf]
          %v387 = vld [vmem:[%s374 + $0xc] sm:$0xf]
          %v388 = vld [vmem:[%s374 + $0x10] sm:$0xf]
          %v389 = vld [vmem:[%s374 + $0x14] sm:$0xf]
          %v390 = vld [vmem:[%s374 + $0x18] sm:$0xf]
          %v391 = vld [vmem:[%s374 + $0x1c] sm:$0xf]
          %392 = vst [vmem:[#allocation2] sm:$0xf] %v384
          %393 = vst [vmem:[#allocation2 + $0x4] sm:$0xf] %v385
          %394 = vst [vmem:[#allocation2 + $0x8] sm:$0xf] %v386
          %395 = vst [vmem:[#allocation2 + $0xc] sm:$0xf] %v387
          %396 = vst [vmem:[#allocation2 + $0x10] sm:$0xf] %v388
          %397 = vst [vmem:[#allocation2 + $0x14] sm:$0xf] %v389
          %398 = vst [vmem:[#allocation2 + $0x18] sm:$0xf] %v390
          %399 = vst [vmem:[#allocation2 + $0x1c] sm:$0xf] %v391
        $region60: #{rnn_model_forward.1} parent=43 // pred_fallthru
          _
        %v400 = vld [vmem:[%s308] sm:$0xff]
        %v401 = vld [vmem:[%s308 + $0x8] sm:$0xff]
        %v402 = vld [vmem:[%s308 + $0x10] sm:$0xff]
        %v403 = vld [vmem:[%s308 + $0x18] sm:$0xff]
        %v404 = vld [vmem:[%s308 + $0x20] sm:$0xff]
        %v405 = vld [vmem:[%s308 + $0x28] sm:$0xff]
        %v406 = vld [vmem:[%s308 + $0x30] sm:$0xff]
        %v407 = vld [vmem:[%s308 + $0x38] sm:$0xff]
        %v408 = vld [vmem:[%s308 + $0x40] sm:$0xff]
        %v409 = vld [vmem:[%s308 + $0x48] sm:$0xff]
        %v410 = vld [vmem:[%s308 + $0x50] sm:$0xff]
        %v411 = vld [vmem:[%s308 + $0x58] sm:$0xff]
        %v412 = vld [vmem:[%s308 + $0x60] sm:$0xff]
        %v413 = vld [vmem:[%s308 + $0x68] sm:$0xff]
        %v414 = vld [vmem:[%s308 + $0x70] sm:$0xff]
        %v415 = vld [vmem:[%s308 + $0x78] sm:$0xff]
        %v416 = vld [vmem:[%s308 + $0x80] sm:$0xff]
        %v417 = vld [vmem:[%s308 + $0x88] sm:$0xff]
        %v418 = vld [vmem:[%s308 + $0x90] sm:$0xff]
        %v419 = vld [vmem:[%s308 + $0x98] sm:$0xff]
        %v420 = vld [vmem:[%s308 + $0xa0] sm:$0xff]
        %v421 = vld [vmem:[%s308 + $0xa8] sm:$0xff]
        %v422 = vld [vmem:[%s308 + $0xb0] sm:$0xff]
        %v423 = vld [vmem:[%s308 + $0xb8] sm:$0xff]
        %v424 = vld [vmem:[%s308 + $0xc0] sm:$0xff]
        %v425 = vld [vmem:[%s308 + $0xc8] sm:$0xff]
        %v426 = vld [vmem:[%s308 + $0xd0] sm:$0xff]
        %v427 = vld [vmem:[%s308 + $0xd8] sm:$0xff]
        %v428 = vld [vmem:[%s308 + $0xe0] sm:$0xff]
        %v429 = vld [vmem:[%s308 + $0xe8] sm:$0xff]
        %v430 = vld [vmem:[%s308 + $0xf0] sm:$0xff]
        %v431 = vld [vmem:[%s308 + $0xf8] sm:$0xff]
        %v432 = vld [vmem:[%s318] sm:$0xff]
        %v433 = vld [vmem:[%s318 + $0x8] sm:$0xff]
        %v434 = vld [vmem:[%s318 + $0x10] sm:$0xff]
        %v435 = vld [vmem:[%s318 + $0x18] sm:$0xff]
        %v436 = vld [vmem:[%s318 + $0x20] sm:$0xff]
        %v437 = vld [vmem:[%s318 + $0x28] sm:$0xff]
        %v438 = vld [vmem:[%s318 + $0x30] sm:$0xff]
        %v439 = vld [vmem:[%s318 + $0x38] sm:$0xff]
        %v440 = vld [vmem:[%s318 + $0x40] sm:$0xff]
        %v441 = vld [vmem:[%s318 + $0x48] sm:$0xff]
        %v442 = vld [vmem:[%s318 + $0x50] sm:$0xff]
        %v443 = vld [vmem:[%s318 + $0x58] sm:$0xff]
        %v444 = vld [vmem:[%s318 + $0x60] sm:$0xff]
        %v445 = vld [vmem:[%s318 + $0x68] sm:$0xff]
        %v446 = vld [vmem:[%s318 + $0x70] sm:$0xff]
        %v447 = vld [vmem:[%s318 + $0x78] sm:$0xff]
        %v448 = vld [vmem:[%s318 + $0x80] sm:$0xff]
        %v449 = vld [vmem:[%s318 + $0x88] sm:$0xff]
        %v450 = vld [vmem:[%s318 + $0x90] sm:$0xff]
        %v451 = vld [vmem:[%s318 + $0x98] sm:$0xff]
        %v452 = vld [vmem:[%s318 + $0xa0] sm:$0xff]
        %v453 = vld [vmem:[%s318 + $0xa8] sm:$0xff]
        %v454 = vld [vmem:[%s318 + $0xb0] sm:$0xff]
        %v455 = vld [vmem:[%s318 + $0xb8] sm:$0xff]
        %v456 = vld [vmem:[%s318 + $0xc0] sm:$0xff]
        %v457 = vld [vmem:[%s318 + $0xc8] sm:$0xff]
        %v458 = vld [vmem:[%s318 + $0xd0] sm:$0xff]
        %v459 = vld [vmem:[%s318 + $0xd8] sm:$0xff]
        %v460 = vld [vmem:[%s318 + $0xe0] sm:$0xff]
        %v461 = vld [vmem:[%s318 + $0xe8] sm:$0xff]
        %v462 = vld [vmem:[%s318 + $0xf0] sm:$0xff]
        %v463 = vld [vmem:[%s318 + $0xf8] sm:$0xff]
        %v464 = vld [vmem:[%s328] sm:$0xf]
        %p465 = scmp.lt.s32.totalorder %s28, 1
        %v466 = vld [vmem:[#allocation2] sm:$0xf]
        %v467 = vld [vmem:[#allocation2 + $0x4] sm:$0xf]
        %v468 = vld [vmem:[#allocation2 + $0x8] sm:$0xf]
        %v469 = vld [vmem:[#allocation2 + $0xc] sm:$0xf]
        %v470 = vld [vmem:[#allocation2 + $0x10] sm:$0xf]
        %v471 = vld [vmem:[#allocation2 + $0x14] sm:$0xf]
        %v472 = vld [vmem:[#allocation2 + $0x18] sm:$0xf]
        %v473 = vld [vmem:[#allocation2 + $0x1c] sm:$0xf]
        %v475 = vperm.slane %v464, 0
        %v476 = vperm.slane %v464, 1
        %v477 = vperm.slane %v464, 2
        %v478 = vperm.slane %v464, 3
        %v491 = vunpack.c.l.b16 %v466
        %v492 = vunpack.c.l.b16 %v467
        %v493 = vunpack.c.l.b16 %v468
        %v494 = vunpack.c.l.b16 %v469
        %v495 = vunpack.c.l.b16 %v470
        %v496 = vunpack.c.l.b16 %v471
        %v497 = vunpack.c.l.b16 %v472
        %v498 = vunpack.c.l.b16 %v473
        %v499 = vpack.c.b16 %v492, %v491
        %v500 = vpack.c.b16 %v494, %v493
        %v501 = vpack.c.b16 %v496, %v495
        %v502 = vpack.c.b16 %v498, %v497
        %v539 = vunpack.c.l.b16 %v400
        %v540 = vunpack.c.h.b16 %v400
        %v541 = vunpack.c.l.b16 %v401
        %v542 = vunpack.c.h.b16 %v401
        %v543 = vunpack.c.l.b16 %v402
        %v544 = vunpack.c.h.b16 %v402
        %v545 = vunpack.c.l.b16 %v403
        %v546 = vunpack.c.h.b16 %v403
        %v547 = vunpack.c.l.b16 %v404
        %v548 = vunpack.c.h.b16 %v404
        %v549 = vunpack.c.l.b16 %v405
        %v550 = vunpack.c.h.b16 %v405
        %v551 = vunpack.c.l.b16 %v406
        %v552 = vunpack.c.h.b16 %v406
        %v553 = vunpack.c.l.b16 %v407
        %v554 = vunpack.c.h.b16 %v407
        %v555 = vunpack.c.l.b16 %v408
        %v556 = vunpack.c.h.b16 %v408
        %v557 = vunpack.c.l.b16 %v409
        %v558 = vunpack.c.h.b16 %v409
        %v559 = vunpack.c.l.b16 %v410
        %v560 = vunpack.c.h.b16 %v410
        %v561 = vunpack.c.l.b16 %v411
        %v562 = vunpack.c.h.b16 %v411
        %v563 = vunpack.c.l.b16 %v412
        %v564 = vunpack.c.h.b16 %v412
        %v565 = vunpack.c.l.b16 %v413
        %v566 = vunpack.c.h.b16 %v413
        %v567 = vunpack.c.l.b16 %v414
        %v568 = vunpack.c.h.b16 %v414
        %v569 = vunpack.c.l.b16 %v415
        %v570 = vunpack.c.h.b16 %v415
        %v571 = vunpack.c.l.b16 %v416
        %v572 = vunpack.c.h.b16 %v416
        %v573 = vunpack.c.l.b16 %v417
        %v574 = vunpack.c.h.b16 %v417
        %v575 = vunpack.c.l.b16 %v418
        %v576 = vunpack.c.h.b16 %v418
        %v577 = vunpack.c.l.b16 %v419
        %v578 = vunpack.c.h.b16 %v419
        %v579 = vunpack.c.l.b16 %v420
        %v580 = vunpack.c.h.b16 %v420
        %v581 = vunpack.c.l.b16 %v421
        %v582 = vunpack.c.h.b16 %v421
        %v583 = vunpack.c.l.b16 %v422
        %v584 = vunpack.c.h.b16 %v422
        %v585 = vunpack.c.l.b16 %v423
        %v586 = vunpack.c.h.b16 %v423
        %v587 = vunpack.c.l.b16 %v424
        %v588 = vunpack.c.h.b16 %v424
        %v589 = vunpack.c.l.b16 %v425
        %v590 = vunpack.c.h.b16 %v425
        %v591 = vunpack.c.l.b16 %v426
        %v592 = vunpack.c.h.b16 %v426
        %v593 = vunpack.c.l.b16 %v427
        %v594 = vunpack.c.h.b16 %v427
        %v595 = vunpack.c.l.b16 %v428
        %v596 = vunpack.c.h.b16 %v428
        %v597 = vunpack.c.l.b16 %v429
        %v598 = vunpack.c.h.b16 %v429
        %v599 = vunpack.c.l.b16 %v430
        %v600 = vunpack.c.h.b16 %v430
        %v601 = vunpack.c.l.b16 %v431
        %v602 = vunpack.c.h.b16 %v431
        %v603 = vpack.c.b16 %v543, %v539
        %v604 = vpack.c.b16 %v544, %v540
        %v605 = vpack.c.b16 %v545, %v541
        %v606 = vpack.c.b16 %v546, %v542
        %v607 = vpack.c.b16 %v551, %v547
        %v608 = vpack.c.b16 %v552, %v548
        %v609 = vpack.c.b16 %v553, %v549
        %v610 = vpack.c.b16 %v554, %v550
        %v611 = vpack.c.b16 %v559, %v555
        %v612 = vpack.c.b16 %v560, %v556
        %v613 = vpack.c.b16 %v561, %v557
        %v614 = vpack.c.b16 %v562, %v558
        %v615 = vpack.c.b16 %v567, %v563
        %v616 = vpack.c.b16 %v568, %v564
        %v617 = vpack.c.b16 %v569, %v565
        %v618 = vpack.c.b16 %v570, %v566
        %v619 = vpack.c.b16 %v575, %v571
        %v620 = vpack.c.b16 %v576, %v572
        %v621 = vpack.c.b16 %v577, %v573
        %v622 = vpack.c.b16 %v578, %v574
        %v623 = vpack.c.b16 %v583, %v579
        %v624 = vpack.c.b16 %v584, %v580
        %v625 = vpack.c.b16 %v585, %v581
        %v626 = vpack.c.b16 %v586, %v582
        %v627 = vpack.c.b16 %v591, %v587
        %v628 = vpack.c.b16 %v592, %v588
        %v629 = vpack.c.b16 %v593, %v589
        %v630 = vpack.c.b16 %v594, %v590
        %v631 = vpack.c.b16 %v599, %v595
        %v632 = vpack.c.b16 %v600, %v596
        %v633 = vpack.c.b16 %v601, %v597
        %v634 = vpack.c.b16 %v602, %v598
        %667 = vmatpush.bf16.msra.mxu0 %v631
        %668 = vmatpush.bf16.msra.mxu0 %v627
        %669 = vmatpush.bf16.msra.mxu0 %v623
        %670 = vmatpush.bf16.msra.mxu0 %v619
        %671 = vmatpush.bf16.msra.mxu0 %v615
        %672 = vmatpush.bf16.msra.mxu0 %v611
        %673 = vmatpush.bf16.msra.mxu0 %v607
        %674 = vmatpush.bf16.msra.mxu0 %v603
        %675 = vmatmul.bf16.gmra.mxu0 %v499
        %v676 = vpop.f32.mrf.mxu0
        %v677 = vadd.f32 %v475, %v676
        %v678 = vpop.f32.mrf.mxu0
        %v679 = vadd.f32 %v475, %v678
        %680 = vmatmul.bf16.gmra.mxu0 %v500
        %v681 = vpop.f32.mrf.mxu0
        %v682 = vadd.f32 %v475, %v681
        %v683 = vpop.f32.mrf.mxu0
        %v684 = vadd.f32 %v475, %v683
        %685 = vmatmul.bf16.gmra.mxu0 %v501
        %v686 = vpop.f32.mrf.mxu0
        %v687 = vadd.f32 %v475, %v686
        %v688 = vpop.f32.mrf.mxu0
        %v689 = vadd.f32 %v475, %v688
        %690 = vmatmul.bf16.gmra.mxu0 %v502
        %v691 = vpop.f32.mrf.mxu0
        %v692 = vadd.f32 %v475, %v691
        %v693 = vpop.f32.mrf.mxu0
        %v694 = vadd.f32 %v475, %v693
        %695 = vdwg.mxu0
        %696 = vmatpush.bf16.msra.mxu0 %v632
        %697 = vmatpush.bf16.msra.mxu0 %v628
        %698 = vmatpush.bf16.msra.mxu0 %v624
        %699 = vmatpush.bf16.msra.mxu0 %v620
        %700 = vmatpush.bf16.msra.mxu0 %v616
        %701 = vmatpush.bf16.msra.mxu0 %v612
        %702 = vmatpush.bf16.msra.mxu0 %v608
        %703 = vmatpush.bf16.msra.mxu0 %v604
        %704 = vmatmul.bf16.gmra.mxu0 %v499
        %v705 = vpop.f32.mrf.mxu0
        %v706 = vadd.f32 %v476, %v705
        %v707 = vpop.f32.mrf.mxu0
        %v708 = vadd.f32 %v476, %v707
        %709 = vmatmul.bf16.gmra.mxu0 %v500
        %v710 = vpop.f32.mrf.mxu0
        %v711 = vadd.f32 %v476, %v710
        %v712 = vpop.f32.mrf.mxu0
        %v713 = vadd.f32 %v476, %v712
        %714 = vmatmul.bf16.gmra.mxu0 %v501
        %v715 = vpop.f32.mrf.mxu0
        %v716 = vadd.f32 %v476, %v715
        %v717 = vpop.f32.mrf.mxu0
        %v718 = vadd.f32 %v476, %v717
        %719 = vmatmul.bf16.gmra.mxu0 %v502
        %v720 = vpop.f32.mrf.mxu0
        %v721 = vadd.f32 %v476, %v720
        %v722 = vpop.f32.mrf.mxu0
        %v723 = vadd.f32 %v476, %v722
        %724 = vdwg.mxu0
        %725 = vmatpush.bf16.msra.mxu0 %v633
        %726 = vmatpush.bf16.msra.mxu0 %v629
        %727 = vmatpush.bf16.msra.mxu0 %v625
        %728 = vmatpush.bf16.msra.mxu0 %v621
        %729 = vmatpush.bf16.msra.mxu0 %v617
        %730 = vmatpush.bf16.msra.mxu0 %v613
        %731 = vmatpush.bf16.msra.mxu0 %v609
        %732 = vmatpush.bf16.msra.mxu0 %v605
        %733 = vmatmul.bf16.gmra.mxu0 %v499
        %v734 = vpop.f32.mrf.mxu0
        %v735 = vadd.f32 %v477, %v734
        %v736 = vpop.f32.mrf.mxu0
        %v737 = vadd.f32 %v477, %v736
        %738 = vmatmul.bf16.gmra.mxu0 %v500
        %v739 = vpop.f32.mrf.mxu0
        %v740 = vadd.f32 %v477, %v739
        %v741 = vpop.f32.mrf.mxu0
        %v742 = vadd.f32 %v477, %v741
        %743 = vmatmul.bf16.gmra.mxu0 %v501
        %v744 = vpop.f32.mrf.mxu0
        %v745 = vadd.f32 %v477, %v744
        %v746 = vpop.f32.mrf.mxu0
        %v747 = vadd.f32 %v477, %v746
        %748 = vmatmul.bf16.gmra.mxu0 %v502
        %v749 = vpop.f32.mrf.mxu0
        %v750 = vadd.f32 %v477, %v749
        %v751 = vpop.f32.mrf.mxu0
        %v752 = vadd.f32 %v477, %v751
        %753 = vdwg.mxu0
        %754 = vmatpush.bf16.msra.mxu0 %v634
        %755 = vmatpush.bf16.msra.mxu0 %v630
        %756 = vmatpush.bf16.msra.mxu0 %v626
        %757 = vmatpush.bf16.msra.mxu0 %v622
        %758 = vmatpush.bf16.msra.mxu0 %v618
        %759 = vmatpush.bf16.msra.mxu0 %v614
        %760 = vmatpush.bf16.msra.mxu0 %v610
        %761 = vmatpush.bf16.msra.mxu0 %v606
        %762 = vmatmul.bf16.gmra.mxu0 %v499
        %v763 = vpop.f32.mrf.mxu0
        %v764 = vadd.f32 %v478, %v763
        %v765 = vpop.f32.mrf.mxu0
        %v766 = vadd.f32 %v478, %v765
        %767 = vmatmul.bf16.gmra.mxu0 %v500
        %v768 = vpop.f32.mrf.mxu0
        %v769 = vadd.f32 %v478, %v768
        %v770 = vpop.f32.mrf.mxu0
        %v771 = vadd.f32 %v478, %v770
        %772 = vmatmul.bf16.gmra.mxu0 %v501
        %v773 = vpop.f32.mrf.mxu0
        %v774 = vadd.f32 %v478, %v773
        %v775 = vpop.f32.mrf.mxu0
        %v776 = vadd.f32 %v478, %v775
        %777 = vmatmul.bf16.gmra.mxu0 %v502
        %v778 = vpop.f32.mrf.mxu0
        %v779 = vadd.f32 %v478, %v778
        %v780 = vpop.f32.mrf.mxu0
        %v781 = vadd.f32 %v478, %v780
        %782 = vdwg.mxu0
        %v815 = vunpack.c.l.b16 %v432
        %v816 = vunpack.c.h.b16 %v432
        %v817 = vunpack.c.l.b16 %v433
        %v818 = vunpack.c.h.b16 %v433
        %v819 = vunpack.c.l.b16 %v434
        %v820 = vunpack.c.h.b16 %v434
        %v821 = vunpack.c.l.b16 %v435
        %v822 = vunpack.c.h.b16 %v435
        %v823 = vunpack.c.l.b16 %v436
        %v824 = vunpack.c.h.b16 %v436
        %v825 = vunpack.c.l.b16 %v437
        %v826 = vunpack.c.h.b16 %v437
        %v827 = vunpack.c.l.b16 %v438
        %v828 = vunpack.c.h.b16 %v438
        %v829 = vunpack.c.l.b16 %v439
        %v830 = vunpack.c.h.b16 %v439
        %v831 = vunpack.c.l.b16 %v440
        %v832 = vunpack.c.h.b16 %v440
        %v833 = vunpack.c.l.b16 %v441
        %v834 = vunpack.c.h.b16 %v441
        %v835 = vunpack.c.l.b16 %v442
        %v836 = vunpack.c.h.b16 %v442
        %v837 = vunpack.c.l.b16 %v443
        %v838 = vunpack.c.h.b16 %v443
        %v839 = vunpack.c.l.b16 %v444
        %v840 = vunpack.c.h.b16 %v444
        %v841 = vunpack.c.l.b16 %v445
        %v842 = vunpack.c.h.b16 %v445
        %v843 = vunpack.c.l.b16 %v446
        %v844 = vunpack.c.h.b16 %v446
        %v845 = vunpack.c.l.b16 %v447
        %v846 = vunpack.c.h.b16 %v447
        %v847 = vunpack.c.l.b16 %v448
        %v848 = vunpack.c.h.b16 %v448
        %v849 = vunpack.c.l.b16 %v449
        %v850 = vunpack.c.h.b16 %v449
        %v851 = vunpack.c.l.b16 %v450
        %v852 = vunpack.c.h.b16 %v450
        %v853 = vunpack.c.l.b16 %v451
        %v854 = vunpack.c.h.b16 %v451
        %v855 = vunpack.c.l.b16 %v452
        %v856 = vunpack.c.h.b16 %v452
        %v857 = vunpack.c.l.b16 %v453
        %v858 = vunpack.c.h.b16 %v453
        %v859 = vunpack.c.l.b16 %v454
        %v860 = vunpack.c.h.b16 %v454
        %v861 = vunpack.c.l.b16 %v455
        %v862 = vunpack.c.h.b16 %v455
        %v863 = vunpack.c.l.b16 %v456
        %v864 = vunpack.c.h.b16 %v456
        %v865 = vunpack.c.l.b16 %v457
        %v866 = vunpack.c.h.b16 %v457
        %v867 = vunpack.c.l.b16 %v458
        %v868 = vunpack.c.h.b16 %v458
        %v869 = vunpack.c.l.b16 %v459
        %v870 = vunpack.c.h.b16 %v459
        %v871 = vunpack.c.l.b16 %v460
        %v872 = vunpack.c.h.b16 %v460
        %v873 = vunpack.c.l.b16 %v461
        %v874 = vunpack.c.h.b16 %v461
        %v875 = vunpack.c.l.b16 %v462
        %v876 = vunpack.c.h.b16 %v462
        %v877 = vunpack.c.l.b16 %v463
        %v878 = vunpack.c.h.b16 %v463
        %v879 = vpack.c.b16 %v819, %v815
        %v880 = vpack.c.b16 %v820, %v816
        %v881 = vpack.c.b16 %v821, %v817
        %v882 = vpack.c.b16 %v822, %v818
        %v883 = vpack.c.b16 %v827, %v823
        %v884 = vpack.c.b16 %v828, %v824
        %v885 = vpack.c.b16 %v829, %v825
        %v886 = vpack.c.b16 %v830, %v826
        %v887 = vpack.c.b16 %v835, %v831
        %v888 = vpack.c.b16 %v836, %v832
        %v889 = vpack.c.b16 %v837, %v833
        %v890 = vpack.c.b16 %v838, %v834
        %v891 = vpack.c.b16 %v843, %v839
        %v892 = vpack.c.b16 %v844, %v840
        %v893 = vpack.c.b16 %v845, %v841
        %v894 = vpack.c.b16 %v846, %v842
        %v895 = vpack.c.b16 %v851, %v847
        %v896 = vpack.c.b16 %v852, %v848
        %v897 = vpack.c.b16 %v853, %v849
        %v898 = vpack.c.b16 %v854, %v850
        %v899 = vpack.c.b16 %v859, %v855
        %v900 = vpack.c.b16 %v860, %v856
        %v901 = vpack.c.b16 %v861, %v857
        %v902 = vpack.c.b16 %v862, %v858
        %v903 = vpack.c.b16 %v867, %v863
        %v904 = vpack.c.b16 %v868, %v864
        %v905 = vpack.c.b16 %v869, %v865
        %v906 = vpack.c.b16 %v870, %v866
        %v907 = vpack.c.b16 %v875, %v871
        %v908 = vpack.c.b16 %v876, %v872
        %v909 = vpack.c.b16 %v877, %v873
        %v910 = vpack.c.b16 %v878, %v874
        %943 = vmatpush.bf16.msra.mxu0 %v907
        %944 = vmatpush.bf16.msra.mxu0 %v903
        %945 = vmatpush.bf16.msra.mxu0 %v899
        %946 = vmatpush.bf16.msra.mxu0 %v895
        %947 = vmatpush.bf16.msra.mxu0 %v891
        %948 = vmatpush.bf16.msra.mxu0 %v887
        %949 = vmatpush.bf16.msra.mxu0 %v883
        %950 = vmatpush.bf16.msra.mxu0 %v879
        %951 = vmatmul.bf16.gmra.mxu0 0
        %v952 = vpop.f32.mrf.mxu0
        %v953 = vadd.f32 0.0, %v952
        %v954 = vpop.f32.mrf.mxu0
        %955 = vdwg.mxu0
        %956 = vmatpush.bf16.msra.mxu0 %v908
        %957 = vmatpush.bf16.msra.mxu0 %v904
        %958 = vmatpush.bf16.msra.mxu0 %v900
        %959 = vmatpush.bf16.msra.mxu0 %v896
        %960 = vmatpush.bf16.msra.mxu0 %v892
        %961 = vmatpush.bf16.msra.mxu0 %v888
        %962 = vmatpush.bf16.msra.mxu0 %v884
        %963 = vmatpush.bf16.msra.mxu0 %v880
        %964 = vmatmul.bf16.gmra.mxu0 0
        %v965 = vpop.f32.mrf.mxu0
        %v966 = vadd.f32 0.0, %v965
        %v967 = vpop.f32.mrf.mxu0
        %968 = vdwg.mxu0
        %969 = vmatpush.bf16.msra.mxu0 %v909
        %970 = vmatpush.bf16.msra.mxu0 %v905
        %971 = vmatpush.bf16.msra.mxu0 %v901
        %972 = vmatpush.bf16.msra.mxu0 %v897
        %973 = vmatpush.bf16.msra.mxu0 %v893
        %974 = vmatpush.bf16.msra.mxu0 %v889
        %975 = vmatpush.bf16.msra.mxu0 %v885
        %976 = vmatpush.bf16.msra.mxu0 %v881
        %977 = vmatmul.bf16.gmra.mxu0 0
        %v978 = vpop.f32.mrf.mxu0
        %v979 = vadd.f32 0.0, %v978
        %v980 = vpop.f32.mrf.mxu0
        %981 = vdwg.mxu0
        %982 = vmatpush.bf16.msra.mxu0 %v910
        %983 = vmatpush.bf16.msra.mxu0 %v906
        %984 = vmatpush.bf16.msra.mxu0 %v902
        %985 = vmatpush.bf16.msra.mxu0 %v898
        %986 = vmatpush.bf16.msra.mxu0 %v894
        %987 = vmatpush.bf16.msra.mxu0 %v890
        %988 = vmatpush.bf16.msra.mxu0 %v886
        %989 = vmatpush.bf16.msra.mxu0 %v882
        %990 = vmatmul.bf16.gmra.mxu0 0
        %v991 = vpop.f32.mrf.mxu0
        %v992 = vadd.f32 0.0, %v991
        %v993 = vpop.f32.mrf.mxu0
        %994 = vdwg.mxu0
        %v995 = vadd.f32 %v677, %v953
        %v996 = vadd.f32 %v706, %v966
        %v997 = vadd.f32 %v735, %v979
        %v998 = vadd.f32 %v764, %v992
        %v999 = vxor.u32 %v995, 2147483648
        %v1000 = vxor.u32 %v996, 2147483648
        %v1001 = vxor.u32 %v997, 2147483648
        %v1002 = vmul.f32 %v999, 1.442695
        %v1003 = vpow.pop %v1002
        %v1004 = vmul.f32 %v1000, 1.442695
        %v1005 = vpow.pop %v1004
        %v1006 = vmul.f32 %v1001, 1.442695
        %v1007 = vpow.pop %v1006
        %v1008 = vadd.f32 %v1003, 1.0
        %v1009 = vadd.f32 %v1005, 1.0
        %v1010 = vadd.f32 %v1007, 1.0
        %v1011 = vrcp.pop %v1008
        %v1012 = vmul.f32 %v1008, %v1011
        %v1013 = vsub.f32 1.0, %v1012
        %v1014 = vmul.f32 %v1011, %v1013
        %v1015 = vadd.f32 %v1011, %v1014
        %vm1016 = vweird.f32 %v1008
        %vm1017 = vweird.f32 %v1011
        %vm1018 = vmor %vm1016, %vm1017
        %v1019 = vsel %vm1018, %v1011, %v1015
        %v1020 = vand.u32 2147483647, %v1008
        %vm1021 = vcmp.eq.f32.partialorder %v1020, 8.507059e+37
        %v1022 = vand.u32 %v1008, 2147483648
        %v1023 = vor.u32 1.1754944e-38, %v1022
        %v1024 = vsel %vm1021, %v1023, %v1019
        %v1025 = vmul.f32 1.0, %v1024
        %v1026 = vrcp.pop %v1009
        %v1027 = vmul.f32 %v1009, %v1026
        %v1028 = vsub.f32 1.0, %v1027
        %v1029 = vmul.f32 %v1026, %v1028
        %v1030 = vadd.f32 %v1026, %v1029
        %vm1031 = vweird.f32 %v1009
        %vm1032 = vweird.f32 %v1026
        %vm1033 = vmor %vm1031, %vm1032
        %v1034 = vsel %vm1033, %v1026, %v1030
        %v1035 = vand.u32 2147483647, %v1009
        %vm1036 = vcmp.eq.f32.partialorder %v1035, 8.507059e+37
        %v1037 = vand.u32 %v1009, 2147483648
        %v1038 = vor.u32 1.1754944e-38, %v1037
        %v1039 = vsel %vm1036, %v1038, %v1034
        %v1040 = vmul.f32 1.0, %v1039
        %v1041 = vrcp.pop %v1010
        %v1042 = vmul.f32 %v1010, %v1041
        %v1043 = vsub.f32 1.0, %v1042
        %v1044 = vmul.f32 %v1041, %v1043
        %v1045 = vadd.f32 %v1041, %v1044
        %vm1046 = vweird.f32 %v1010
        %vm1047 = vweird.f32 %v1041
        %vm1048 = vmor %vm1046, %vm1047
        %v1049 = vsel %vm1048, %v1041, %v1045
        %v1050 = vand.u32 2147483647, %v1010
        %vm1051 = vcmp.eq.f32.partialorder %v1050, 8.507059e+37
        %v1052 = vand.u32 %v1010, 2147483648
        %v1053 = vor.u32 1.1754944e-38, %v1052
        %v1054 = vsel %vm1051, %v1053, %v1049
        %v1055 = vmul.f32 1.0, %v1054
        %v1056 = vtanh.pop %v998
        %v1057 = vmul.f32 %v1040, 0.0
        %v1058 = vmul.f32 %v1025, %v1056
        %v1059 = vadd.f32 %v1057, %v1058
        %v1060 = vtanh.pop %v1059
        %v1061 = vmul.f32 %v1055, %v1060
        %v1062 = vpack.c.bf16 %v1061, %v1061
        // Predicated region
        $region61: #{rnn_model_forward.1} parent=43 // pred_check
          %p1063 = pneg %p465
        $region62: #{rnn_model_forward.1} parent=43 // pred_check_branch
          %1065 = sbr.rel (%p1063) target = $region64
        $region63: #{rnn_model_forward.1} parent=43 // pred_region
          %1066 = vst [vmem:[#allocation2] sm:$0xf] %v1062
        $region64: #{rnn_model_forward.1} parent=43 // pred_fallthru
          _
        %1067 = vmatpush.bf16.msra.mxu0 %v907
        %1068 = vmatpush.bf16.msra.mxu0 %v903
        %1069 = vmatpush.bf16.msra.mxu0 %v899
        %1070 = vmatpush.bf16.msra.mxu0 %v895
        %1071 = vmatpush.bf16.msra.mxu0 %v891
        %1072 = vmatpush.bf16.msra.mxu0 %v887
        %1073 = vmatpush.bf16.msra.mxu0 %v883
        %1074 = vmatpush.bf16.msra.mxu0 %v879
        %1075 = vmatmul.bf16.gmra.mxu0 %v1062
        %v1076 = vpop.f32.mrf.mxu0
        %v1077 = vadd.f32 0.0, %v1076
        %v1078 = vpop.f32.mrf.mxu0
        %1079 = vdwg.mxu0
        %1080 = vmatpush.bf16.msra.mxu0 %v908
        %1081 = vmatpush.bf16.msra.mxu0 %v904
        %1082 = vmatpush.bf16.msra.mxu0 %v900
        %1083 = vmatpush.bf16.msra.mxu0 %v896
        %1084 = vmatpush.bf16.msra.mxu0 %v892
        %1085 = vmatpush.bf16.msra.mxu0 %v888
        %1086 = vmatpush.bf16.msra.mxu0 %v884
        %1087 = vmatpush.bf16.msra.mxu0 %v880
        %1088 = vmatmul.bf16.gmra.mxu0 %v1062
        %v1089 = vpop.f32.mrf.mxu0
        %v1090 = vadd.f32 0.0, %v1089
        %v1091 = vpop.f32.mrf.mxu0
        %1092 = vdwg.mxu0
        %1093 = vmatpush.bf16.msra.mxu0 %v909
        %1094 = vmatpush.bf16.msra.mxu0 %v905
        %1095 = vmatpush.bf16.msra.mxu0 %v901
        %1096 = vmatpush.bf16.msra.mxu0 %v897
        %1097 = vmatpush.bf16.msra.mxu0 %v893
        %1098 = vmatpush.bf16.msra.mxu0 %v889
        %1099 = vmatpush.bf16.msra.mxu0 %v885
        %1100 = vmatpush.bf16.msra.mxu0 %v881
        %1101 = vmatmul.bf16.gmra.mxu0 %v1062
        %v1102 = vpop.f32.mrf.mxu0
        %v1103 = vadd.f32 0.0, %v1102
        %v1104 = vpop.f32.mrf.mxu0
        %1105 = vdwg.mxu0
        %1106 = vmatpush.bf16.msra.mxu0 %v910
        %1107 = vmatpush.bf16.msra.mxu0 %v906
        %1108 = vmatpush.bf16.msra.mxu0 %v902
        %1109 = vmatpush.bf16.msra.mxu0 %v898
        %1110 = vmatpush.bf16.msra.mxu0 %v894
        %1111 = vmatpush.bf16.msra.mxu0 %v890
        %1112 = vmatpush.bf16.msra.mxu0 %v886
        %1113 = vmatpush.bf16.msra.mxu0 %v882
        %1114 = vmatmul.bf16.gmra.mxu0 %v1062
        %v1115 = vpop.f32.mrf.mxu0
        %v1116 = vadd.f32 0.0, %v1115
        %v1117 = vpop.f32.mrf.mxu0
        %1118 = vdwg.mxu0
        %v1119 = vadd.f32 %v679, %v1077
        %v1120 = vadd.f32 %v708, %v1090
        %v1121 = vadd.f32 %v737, %v1103
        %v1122 = vadd.f32 %v766, %v1116
        %v1123 = vxor.u32 %v1119, 2147483648
        %v1124 = vxor.u32 %v1120, 2147483648
        %v1125 = vxor.u32 %v1121, 2147483648
        %v1126 = vmul.f32 %v1123, 1.442695
        %v1127 = vpow.pop %v1126
        %v1128 = vmul.f32 %v1124, 1.442695
        %v1129 = vpow.pop %v1128
        %v1130 = vmul.f32 %v1125, 1.442695
        %v1131 = vpow.pop %v1130
        %v1132 = vadd.f32 %v1127, 1.0
        %v1133 = vadd.f32 %v1129, 1.0
        %v1134 = vadd.f32 %v1131, 1.0
        %v1135 = vrcp.pop %v1132
        %v1136 = vmul.f32 %v1132, %v1135
        %v1137 = vsub.f32 1.0, %v1136
        %v1138 = vmul.f32 %v1135, %v1137
        %v1139 = vadd.f32 %v1135, %v1138
        %vm1140 = vweird.f32 %v1132
        %vm1141 = vweird.f32 %v1135
        %vm1142 = vmor %vm1140, %vm1141
        %v1143 = vsel %vm1142, %v1135, %v1139
        %v1144 = vand.u32 2147483647, %v1132
        %vm1145 = vcmp.eq.f32.partialorder %v1144, 8.507059e+37
        %v1146 = vand.u32 %v1132, 2147483648
        %v1147 = vor.u32 1.1754944e-38, %v1146
        %v1148 = vsel %vm1145, %v1147, %v1143
        %v1149 = vmul.f32 1.0, %v1148
        %v1150 = vrcp.pop %v1133
        %v1151 = vmul.f32 %v1133, %v1150
        %v1152 = vsub.f32 1.0, %v1151
        %v1153 = vmul.f32 %v1150, %v1152
        %v1154 = vadd.f32 %v1150, %v1153
        %vm1155 = vweird.f32 %v1133
        %vm1156 = vweird.f32 %v1150
        %vm1157 = vmor %vm1155, %vm1156
        %v1158 = vsel %vm1157, %v1150, %v1154
        %v1159 = vand.u32 2147483647, %v1133
        %vm1160 = vcmp.eq.f32.partialorder %v1159, 8.507059e+37
        %v1161 = vand.u32 %v1133, 2147483648
        %v1162 = vor.u32 1.1754944e-38, %v1161
        %v1163 = vsel %vm1160, %v1162, %v1158
        %v1164 = vmul.f32 1.0, %v1163
        %v1165 = vrcp.pop %v1134
        %v1166 = vmul.f32 %v1134, %v1165
        %v1167 = vsub.f32 1.0, %v1166
        %v1168 = vmul.f32 %v1165, %v1167
        %v1169 = vadd.f32 %v1165, %v1168
        %vm1170 = vweird.f32 %v1134
        %vm1171 = vweird.f32 %v1165
        %vm1172 = vmor %vm1170, %vm1171
        %v1173 = vsel %vm1172, %v1165, %v1169
        %v1174 = vand.u32 2147483647, %v1134
        %vm1175 = vcmp.eq.f32.partialorder %v1174, 8.507059e+37
        %v1176 = vand.u32 %v1134, 2147483648
        %v1177 = vor.u32 1.1754944e-38, %v1176
        %v1178 = vsel %vm1175, %v1177, %v1173
        %v1179 = vmul.f32 1.0, %v1178
        %v1180 = vtanh.pop %v1122
        %v1181 = vmul.f32 %v1164, %v1059
        %v1182 = vmul.f32 %v1149, %v1180
        %v1183 = vadd.f32 %v1181, %v1182
        %v1184 = vtanh.pop %v1183
        %v1185 = vmul.f32 %v1179, %v1184
        %v1186 = vpack.c.bf16 %v1185, %v1185
        // Predicated region
        $region65: #{rnn_model_forward.1} parent=43 // pred_check
          %p1187 = pneg %p465
        $region66: #{rnn_model_forward.1} parent=43 // pred_check_branch
          %1189 = sbr.rel (%p1187) target = $region68
        $region67: #{rnn_model_forward.1} parent=43 // pred_region
          %s1190 = scalar_lea.vmem [#allocation2], 4
          %1191 = vst [vmem:[%s1190] sm:$0xf] %v1186
        $region68: #{rnn_model_forward.1} parent=43 // pred_fallthru
          _
        %1192 = vmatpush.bf16.msra.mxu0 %v907
        %1193 = vmatpush.bf16.msra.mxu0 %v903
        %1194 = vmatpush.bf16.msra.mxu0 %v899
        %1195 = vmatpush.bf16.msra.mxu0 %v895
        %1196 = vmatpush.bf16.msra.mxu0 %v891
        %1197 = vmatpush.bf16.msra.mxu0 %v887
        %1198 = vmatpush.bf16.msra.mxu0 %v883
        %1199 = vmatpush.bf16.msra.mxu0 %v879
        %1200 = vmatmul.bf16.gmra.mxu0 %v1186
        %v1201 = vpop.f32.mrf.mxu0
        %v1202 = vadd.f32 0.0, %v1201
        %v1203 = vpop.f32.mrf.mxu0
        %1204 = vdwg.mxu0
        %1205 = vmatpush.bf16.msra.mxu0 %v908
        %1206 = vmatpush.bf16.msra.mxu0 %v904
        %1207 = vmatpush.bf16.msra.mxu0 %v900
        %1208 = vmatpush.bf16.msra.mxu0 %v896
        %1209 = vmatpush.bf16.msra.mxu0 %v892
        %1210 = vmatpush.bf16.msra.mxu0 %v888
        %1211 = vmatpush.bf16.msra.mxu0 %v884
        %1212 = vmatpush.bf16.msra.mxu0 %v880
        %1213 = vmatmul.bf16.gmra.mxu0 %v1186
        %v1214 = vpop.f32.mrf.mxu0
        %v1215 = vadd.f32 0.0, %v1214
        %v1216 = vpop.f32.mrf.mxu0
        %1217 = vdwg.mxu0
        %1218 = vmatpush.bf16.msra.mxu0 %v909
        %1219 = vmatpush.bf16.msra.mxu0 %v905
        %1220 = vmatpush.bf16.msra.mxu0 %v901
        %1221 = vmatpush.bf16.msra.mxu0 %v897
        %1222 = vmatpush.bf16.msra.mxu0 %v893
        %1223 = vmatpush.bf16.msra.mxu0 %v889
        %1224 = vmatpush.bf16.msra.mxu0 %v885
        %1225 = vmatpush.bf16.msra.mxu0 %v881
        %1226 = vmatmul.bf16.gmra.mxu0 %v1186
        %v1227 = vpop.f32.mrf.mxu0
        %v1228 = vadd.f32 0.0, %v1227
        %v1229 = vpop.f32.mrf.mxu0
        %1230 = vdwg.mxu0
        %1231 = vmatpush.bf16.msra.mxu0 %v910
        %1232 = vmatpush.bf16.msra.mxu0 %v906
        %1233 = vmatpush.bf16.msra.mxu0 %v902
        %1234 = vmatpush.bf16.msra.mxu0 %v898
        %1235 = vmatpush.bf16.msra.mxu0 %v894
        %1236 = vmatpush.bf16.msra.mxu0 %v890
        %1237 = vmatpush.bf16.msra.mxu0 %v886
        %1238 = vmatpush.bf16.msra.mxu0 %v882
        %1239 = vmatmul.bf16.gmra.mxu0 %v1186
        %v1240 = vpop.f32.mrf.mxu0
        %v1241 = vadd.f32 0.0, %v1240
        %v1242 = vpop.f32.mrf.mxu0
        %1243 = vdwg.mxu0
        %v1244 = vadd.f32 %v682, %v1202
        %v1245 = vadd.f32 %v711, %v1215
        %v1246 = vadd.f32 %v740, %v1228
        %v1247 = vadd.f32 %v769, %v1241
        %v1248 = vxor.u32 %v1244, 2147483648
        %v1249 = vxor.u32 %v1245, 2147483648
        %v1250 = vxor.u32 %v1246, 2147483648
        %v1251 = vmul.f32 %v1248, 1.442695
        %v1252 = vpow.pop %v1251
        %v1253 = vmul.f32 %v1249, 1.442695
        %v1254 = vpow.pop %v1253
        %v1255 = vmul.f32 %v1250, 1.442695
        %v1256 = vpow.pop %v1255
        %v1257 = vadd.f32 %v1252, 1.0
        %v1258 = vadd.f32 %v1254, 1.0
        %v1259 = vadd.f32 %v1256, 1.0
        %v1260 = vrcp.pop %v1257
        %v1261 = vmul.f32 %v1257, %v1260
        %v1262 = vsub.f32 1.0, %v1261
        %v1263 = vmul.f32 %v1260, %v1262
        %v1264 = vadd.f32 %v1260, %v1263
        %vm1265 = vweird.f32 %v1257
        %vm1266 = vweird.f32 %v1260
        %vm1267 = vmor %vm1265, %vm1266
        %v1268 = vsel %vm1267, %v1260, %v1264
        %v1269 = vand.u32 2147483647, %v1257
        %vm1270 = vcmp.eq.f32.partialorder %v1269, 8.507059e+37
        %v1271 = vand.u32 %v1257, 2147483648
        %v1272 = vor.u32 1.1754944e-38, %v1271
        %v1273 = vsel %vm1270, %v1272, %v1268
        %v1274 = vmul.f32 1.0, %v1273
        %v1275 = vrcp.pop %v1258
        %v1276 = vmul.f32 %v1258, %v1275
        %v1277 = vsub.f32 1.0, %v1276
        %v1278 = vmul.f32 %v1275, %v1277
        %v1279 = vadd.f32 %v1275, %v1278
        %vm1280 = vweird.f32 %v1258
        %vm1281 = vweird.f32 %v1275
        %vm1282 = vmor %vm1280, %vm1281
        %v1283 = vsel %vm1282, %v1275, %v1279
        %v1284 = vand.u32 2147483647, %v1258
        %vm1285 = vcmp.eq.f32.partialorder %v1284, 8.507059e+37
        %v1286 = vand.u32 %v1258, 2147483648
        %v1287 = vor.u32 1.1754944e-38, %v1286
        %v1288 = vsel %vm1285, %v1287, %v1283
        %v1289 = vmul.f32 1.0, %v1288
        %v1290 = vrcp.pop %v1259
        %v1291 = vmul.f32 %v1259, %v1290
        %v1292 = vsub.f32 1.0, %v1291
        %v1293 = vmul.f32 %v1290, %v1292
        %v1294 = vadd.f32 %v1290, %v1293
        %vm1295 = vweird.f32 %v1259
        %vm1296 = vweird.f32 %v1290
        %vm1297 = vmor %vm1295, %vm1296
        %v1298 = vsel %vm1297, %v1290, %v1294
        %v1299 = vand.u32 2147483647, %v1259
        %vm1300 = vcmp.eq.f32.partialorder %v1299, 8.507059e+37
        %v1301 = vand.u32 %v1259, 2147483648
        %v1302 = vor.u32 1.1754944e-38, %v1301
        %v1303 = vsel %vm1300, %v1302, %v1298
        %v1304 = vmul.f32 1.0, %v1303
        %v1305 = vtanh.pop %v1247
        %v1306 = vmul.f32 %v1289, %v1183
        %v1307 = vmul.f32 %v1274, %v1305
        %v1308 = vadd.f32 %v1306, %v1307
        %v1309 = vtanh.pop %v1308
        %v1310 = vmul.f32 %v1304, %v1309
        %v1311 = vpack.c.bf16 %v1310, %v1310
        // Predicated region
        $region69: #{rnn_model_forward.1} parent=43 // pred_check
          %p1312 = pneg %p465
        $region70: #{rnn_model_forward.1} parent=43 // pred_check_branch
          %1314 = sbr.rel (%p1312) target = $region72
        $region71: #{rnn_model_forward.1} parent=43 // pred_region
          %s1315 = scalar_lea.vmem [#allocation2], 8
          %1316 = vst [vmem:[%s1315] sm:$0xf] %v1311
        $region72: #{rnn_model_forward.1} parent=43 // pred_fallthru
          _
        %1317 = vmatpush.bf16.msra.mxu0 %v907
        %1318 = vmatpush.bf16.msra.mxu0 %v903
        %1319 = vmatpush.bf16.msra.mxu0 %v899
        %1320 = vmatpush.bf16.msra.mxu0 %v895
        %1321 = vmatpush.bf16.msra.mxu0 %v891
        %1322 = vmatpush.bf16.msra.mxu0 %v887
        %1323 = vmatpush.bf16.msra.mxu0 %v883
        %1324 = vmatpush.bf16.msra.mxu0 %v879
        %1325 = vmatmul.bf16.gmra.mxu0 %v1311
        %v1326 = vpop.f32.mrf.mxu0
        %v1327 = vadd.f32 0.0, %v1326
        %v1328 = vpop.f32.mrf.mxu0
        %1329 = vdwg.mxu0
        %1330 = vmatpush.bf16.msra.mxu0 %v908
        %1331 = vmatpush.bf16.msra.mxu0 %v904
        %1332 = vmatpush.bf16.msra.mxu0 %v900
        %1333 = vmatpush.bf16.msra.mxu0 %v896
        %1334 = vmatpush.bf16.msra.mxu0 %v892
        %1335 = vmatpush.bf16.msra.mxu0 %v888
        %1336 = vmatpush.bf16.msra.mxu0 %v884
        %1337 = vmatpush.bf16.msra.mxu0 %v880
        %1338 = vmatmul.bf16.gmra.mxu0 %v1311
        %v1339 = vpop.f32.mrf.mxu0
        %v1340 = vadd.f32 0.0, %v1339
        %v1341 = vpop.f32.mrf.mxu0
        %1342 = vdwg.mxu0
        %1343 = vmatpush.bf16.msra.mxu0 %v909
        %1344 = vmatpush.bf16.msra.mxu0 %v905
        %1345 = vmatpush.bf16.msra.mxu0 %v901
        %1346 = vmatpush.bf16.msra.mxu0 %v897
        %1347 = vmatpush.bf16.msra.mxu0 %v893
        %1348 = vmatpush.bf16.msra.mxu0 %v889
        %1349 = vmatpush.bf16.msra.mxu0 %v885
        %1350 = vmatpush.bf16.msra.mxu0 %v881
        %1351 = vmatmul.bf16.gmra.mxu0 %v1311
        %v1352 = vpop.f32.mrf.mxu0
        %v1353 = vadd.f32 0.0, %v1352
        %v1354 = vpop.f32.mrf.mxu0
        %1355 = vdwg.mxu0
        %1356 = vmatpush.bf16.msra.mxu0 %v910
        %1357 = vmatpush.bf16.msra.mxu0 %v906
        %1358 = vmatpush.bf16.msra.mxu0 %v902
        %1359 = vmatpush.bf16.msra.mxu0 %v898
        %1360 = vmatpush.bf16.msra.mxu0 %v894
        %1361 = vmatpush.bf16.msra.mxu0 %v890
        %1362 = vmatpush.bf16.msra.mxu0 %v886
        %1363 = vmatpush.bf16.msra.mxu0 %v882
        %1364 = vmatmul.bf16.gmra.mxu0 %v1311
        %v1365 = vpop.f32.mrf.mxu0
        %v1366 = vadd.f32 0.0, %v1365
        %v1367 = vpop.f32.mrf.mxu0
        %1368 = vdwg.mxu0
        %v1369 = vadd.f32 %v684, %v1327
        %v1370 = vadd.f32 %v713, %v1340
        %v1371 = vadd.f32 %v742, %v1353
        %v1372 = vadd.f32 %v771, %v1366
        %v1373 = vxor.u32 %v1369, 2147483648
        %v1374 = vxor.u32 %v1370, 2147483648
        %v1375 = vxor.u32 %v1371, 2147483648
        %v1376 = vmul.f32 %v1373, 1.442695
        %v1377 = vpow.pop %v1376
        %v1378 = vmul.f32 %v1374, 1.442695
        %v1379 = vpow.pop %v1378
        %v1380 = vmul.f32 %v1375, 1.442695
        %v1381 = vpow.pop %v1380
        %v1382 = vadd.f32 %v1377, 1.0
        %v1383 = vadd.f32 %v1379, 1.0
        %v1384 = vadd.f32 %v1381, 1.0
        %v1385 = vrcp.pop %v1382
        %v1386 = vmul.f32 %v1382, %v1385
        %v1387 = vsub.f32 1.0, %v1386
        %v1388 = vmul.f32 %v1385, %v1387
        %v1389 = vadd.f32 %v1385, %v1388
        %vm1390 = vweird.f32 %v1382
        %vm1391 = vweird.f32 %v1385
        %vm1392 = vmor %vm1390, %vm1391
        %v1393 = vsel %vm1392, %v1385, %v1389
        %v1394 = vand.u32 2147483647, %v1382
        %vm1395 = vcmp.eq.f32.partialorder %v1394, 8.507059e+37
        %v1396 = vand.u32 %v1382, 2147483648
        %v1397 = vor.u32 1.1754944e-38, %v1396
        %v1398 = vsel %vm1395, %v1397, %v1393
        %v1399 = vmul.f32 1.0, %v1398
        %v1400 = vrcp.pop %v1383
        %v1401 = vmul.f32 %v1383, %v1400
        %v1402 = vsub.f32 1.0, %v1401
        %v1403 = vmul.f32 %v1400, %v1402
        %v1404 = vadd.f32 %v1400, %v1403
        %vm1405 = vweird.f32 %v1383
        %vm1406 = vweird.f32 %v1400
        %vm1407 = vmor %vm1405, %vm1406
        %v1408 = vsel %vm1407, %v1400, %v1404
        %v1409 = vand.u32 2147483647, %v1383
        %vm1410 = vcmp.eq.f32.partialorder %v1409, 8.507059e+37
        %v1411 = vand.u32 %v1383, 2147483648
        %v1412 = vor.u32 1.1754944e-38, %v1411
        %v1413 = vsel %vm1410, %v1412, %v1408
        %v1414 = vmul.f32 1.0, %v1413
        %v1415 = vrcp.pop %v1384
        %v1416 = vmul.f32 %v1384, %v1415
        %v1417 = vsub.f32 1.0, %v1416
        %v1418 = vmul.f32 %v1415, %v1417
        %v1419 = vadd.f32 %v1415, %v1418
        %vm1420 = vweird.f32 %v1384
        %vm1421 = vweird.f32 %v1415
        %vm1422 = vmor %vm1420, %vm1421
        %v1423 = vsel %vm1422, %v1415, %v1419
        %v1424 = vand.u32 2147483647, %v1384
        %vm1425 = vcmp.eq.f32.partialorder %v1424, 8.507059e+37
        %v1426 = vand.u32 %v1384, 2147483648
        %v1427 = vor.u32 1.1754944e-38, %v1426
        %v1428 = vsel %vm1425, %v1427, %v1423
        %v1429 = vmul.f32 1.0, %v1428
        %v1430 = vtanh.pop %v1372
        %v1431 = vmul.f32 %v1414, %v1308
        %v1432 = vmul.f32 %v1399, %v1430
        %v1433 = vadd.f32 %v1431, %v1432
        %v1434 = vtanh.pop %v1433
        %v1435 = vmul.f32 %v1429, %v1434
        %v1436 = vpack.c.bf16 %v1435, %v1435
        // Predicated region
        $region73: #{rnn_model_forward.1} parent=43 // pred_check
          %p1437 = pneg %p465
        $region74: #{rnn_model_forward.1} parent=43 // pred_check_branch
          %1439 = sbr.rel (%p1437) target = $region76
        $region75: #{rnn_model_forward.1} parent=43 // pred_region
          %s1440 = scalar_lea.vmem [#allocation2], 12
          %1441 = vst [vmem:[%s1440] sm:$0xf] %v1436
        $region76: #{rnn_model_forward.1} parent=43 // pred_fallthru
          _
        %1442 = vmatpush.bf16.msra.mxu0 %v907
        %1443 = vmatpush.bf16.msra.mxu0 %v903
        %1444 = vmatpush.bf16.msra.mxu0 %v899
        %1445 = vmatpush.bf16.msra.mxu0 %v895
        %1446 = vmatpush.bf16.msra.mxu0 %v891
        %1447 = vmatpush.bf16.msra.mxu0 %v887
        %1448 = vmatpush.bf16.msra.mxu0 %v883
        %1449 = vmatpush.bf16.msra.mxu0 %v879
        %1450 = vmatmul.bf16.gmra.mxu0 %v1436
        %v1451 = vpop.f32.mrf.mxu0
        %v1452 = vadd.f32 0.0, %v1451
        %v1453 = vpop.f32.mrf.mxu0
        %1454 = vdwg.mxu0
        %1455 = vmatpush.bf16.msra.mxu0 %v908
        %1456 = vmatpush.bf16.msra.mxu0 %v904
        %1457 = vmatpush.bf16.msra.mxu0 %v900
        %1458 = vmatpush.bf16.msra.mxu0 %v896
        %1459 = vmatpush.bf16.msra.mxu0 %v892
        %1460 = vmatpush.bf16.msra.mxu0 %v888
        %1461 = vmatpush.bf16.msra.mxu0 %v884
        %1462 = vmatpush.bf16.msra.mxu0 %v880
        %1463 = vmatmul.bf16.gmra.mxu0 %v1436
        %v1464 = vpop.f32.mrf.mxu0
        %v1465 = vadd.f32 0.0, %v1464
        %v1466 = vpop.f32.mrf.mxu0
        %1467 = vdwg.mxu0
        %1468 = vmatpush.bf16.msra.mxu0 %v909
        %1469 = vmatpush.bf16.msra.mxu0 %v905
        %1470 = vmatpush.bf16.msra.mxu0 %v901
        %1471 = vmatpush.bf16.msra.mxu0 %v897
        %1472 = vmatpush.bf16.msra.mxu0 %v893
        %1473 = vmatpush.bf16.msra.mxu0 %v889
        %1474 = vmatpush.bf16.msra.mxu0 %v885
        %1475 = vmatpush.bf16.msra.mxu0 %v881
        %1476 = vmatmul.bf16.gmra.mxu0 %v1436
        %v1477 = vpop.f32.mrf.mxu0
        %v1478 = vadd.f32 0.0, %v1477
        %v1479 = vpop.f32.mrf.mxu0
        %1480 = vdwg.mxu0
        %1481 = vmatpush.bf16.msra.mxu0 %v910
        %1482 = vmatpush.bf16.msra.mxu0 %v906
        %1483 = vmatpush.bf16.msra.mxu0 %v902
        %1484 = vmatpush.bf16.msra.mxu0 %v898
        %1485 = vmatpush.bf16.msra.mxu0 %v894
        %1486 = vmatpush.bf16.msra.mxu0 %v890
        %1487 = vmatpush.bf16.msra.mxu0 %v886
        %1488 = vmatpush.bf16.msra.mxu0 %v882
        %1489 = vmatmul.bf16.gmra.mxu0 %v1436
        %v1490 = vpop.f32.mrf.mxu0
        %v1491 = vadd.f32 0.0, %v1490
        %v1492 = vpop.f32.mrf.mxu0
        %1493 = vdwg.mxu0
        %v1494 = vadd.f32 %v687, %v1452
        %v1495 = vadd.f32 %v716, %v1465
        %v1496 = vadd.f32 %v745, %v1478
        %v1497 = vadd.f32 %v774, %v1491
        %v1498 = vxor.u32 %v1494, 2147483648
        %v1499 = vxor.u32 %v1495, 2147483648
        %v1500 = vxor.u32 %v1496, 2147483648
        %v1501 = vmul.f32 %v1498, 1.442695
        %v1502 = vpow.pop %v1501
        %v1503 = vmul.f32 %v1499, 1.442695
        %v1504 = vpow.pop %v1503
        %v1505 = vmul.f32 %v1500, 1.442695
        %v1506 = vpow.pop %v1505
        %v1507 = vadd.f32 %v1502, 1.0
        %v1508 = vadd.f32 %v1504, 1.0
        %v1509 = vadd.f32 %v1506, 1.0
        %v1510 = vrcp.pop %v1507
        %v1511 = vmul.f32 %v1507, %v1510
        %v1512 = vsub.f32 1.0, %v1511
        %v1513 = vmul.f32 %v1510, %v1512
        %v1514 = vadd.f32 %v1510, %v1513
        %vm1515 = vweird.f32 %v1507
        %vm1516 = vweird.f32 %v1510
        %vm1517 = vmor %vm1515, %vm1516
        %v1518 = vsel %vm1517, %v1510, %v1514
        %v1519 = vand.u32 2147483647, %v1507
        %vm1520 = vcmp.eq.f32.partialorder %v1519, 8.507059e+37
        %v1521 = vand.u32 %v1507, 2147483648
        %v1522 = vor.u32 1.1754944e-38, %v1521
        %v1523 = vsel %vm1520, %v1522, %v1518
        %v1524 = vmul.f32 1.0, %v1523
        %v1525 = vrcp.pop %v1508
        %v1526 = vmul.f32 %v1508, %v1525
        %v1527 = vsub.f32 1.0, %v1526
        %v1528 = vmul.f32 %v1525, %v1527
        %v1529 = vadd.f32 %v1525, %v1528
        %vm1530 = vweird.f32 %v1508
        %vm1531 = vweird.f32 %v1525
        %vm1532 = vmor %vm1530, %vm1531
        %v1533 = vsel %vm1532, %v1525, %v1529
        %v1534 = vand.u32 2147483647, %v1508
        %vm1535 = vcmp.eq.f32.partialorder %v1534, 8.507059e+37
        %v1536 = vand.u32 %v1508, 2147483648
        %v1537 = vor.u32 1.1754944e-38, %v1536
        %v1538 = vsel %vm1535, %v1537, %v1533
        %v1539 = vmul.f32 1.0, %v1538
        %v1540 = vrcp.pop %v1509
        %v1541 = vmul.f32 %v1509, %v1540
        %v1542 = vsub.f32 1.0, %v1541
        %v1543 = vmul.f32 %v1540, %v1542
        %v1544 = vadd.f32 %v1540, %v1543
        %vm1545 = vweird.f32 %v1509
        %vm1546 = vweird.f32 %v1540
        %vm1547 = vmor %vm1545, %vm1546
        %v1548 = vsel %vm1547, %v1540, %v1544
        %v1549 = vand.u32 2147483647, %v1509
        %vm1550 = vcmp.eq.f32.partialorder %v1549, 8.507059e+37
        %v1551 = vand.u32 %v1509, 2147483648
        %v1552 = vor.u32 1.1754944e-38, %v1551
        %v1553 = vsel %vm1550, %v1552, %v1548
        %v1554 = vmul.f32 1.0, %v1553
        %v1555 = vtanh.pop %v1497
        %v1556 = vmul.f32 %v1539, %v1433
        %v1557 = vmul.f32 %v1524, %v1555
        %v1558 = vadd.f32 %v1556, %v1557
        %v1559 = vtanh.pop %v1558
        %v1560 = vmul.f32 %v1554, %v1559
        %v1561 = vpack.c.bf16 %v1560, %v1560
        // Predicated region
        $region77: #{rnn_model_forward.1} parent=43 // pred_check
          %p1562 = pneg %p465
        $region78: #{rnn_model_forward.1} parent=43 // pred_check_branch
          %1564 = sbr.rel (%p1562) target = $region80
        $region79: #{rnn_model_forward.1} parent=43 // pred_region
          %s1565 = scalar_lea.vmem [#allocation2], 16
          %1566 = vst [vmem:[%s1565] sm:$0xf] %v1561
        $region80: #{rnn_model_forward.1} parent=43 // pred_fallthru
          _
        %1567 = vmatpush.bf16.msra.mxu0 %v907
        %1568 = vmatpush.bf16.msra.mxu0 %v903
        %1569 = vmatpush.bf16.msra.mxu0 %v899
        %1570 = vmatpush.bf16.msra.mxu0 %v895
        %1571 = vmatpush.bf16.msra.mxu0 %v891
        %1572 = vmatpush.bf16.msra.mxu0 %v887
        %1573 = vmatpush.bf16.msra.mxu0 %v883
        %1574 = vmatpush.bf16.msra.mxu0 %v879
        %1575 = vmatmul.bf16.gmra.mxu0 %v1561
        %v1576 = vpop.f32.mrf.mxu0
        %v1577 = vadd.f32 0.0, %v1576
        %v1578 = vpop.f32.mrf.mxu0
        %1579 = vdwg.mxu0
        %1580 = vmatpush.bf16.msra.mxu0 %v908
        %1581 = vmatpush.bf16.msra.mxu0 %v904
        %1582 = vmatpush.bf16.msra.mxu0 %v900
        %1583 = vmatpush.bf16.msra.mxu0 %v896
        %1584 = vmatpush.bf16.msra.mxu0 %v892
        %1585 = vmatpush.bf16.msra.mxu0 %v888
        %1586 = vmatpush.bf16.msra.mxu0 %v884
        %1587 = vmatpush.bf16.msra.mxu0 %v880
        %1588 = vmatmul.bf16.gmra.mxu0 %v1561
        %v1589 = vpop.f32.mrf.mxu0
        %v1590 = vadd.f32 0.0, %v1589
        %v1591 = vpop.f32.mrf.mxu0
        %1592 = vdwg.mxu0
        %1593 = vmatpush.bf16.msra.mxu0 %v909
        %1594 = vmatpush.bf16.msra.mxu0 %v905
        %1595 = vmatpush.bf16.msra.mxu0 %v901
        %1596 = vmatpush.bf16.msra.mxu0 %v897
        %1597 = vmatpush.bf16.msra.mxu0 %v893
        %1598 = vmatpush.bf16.msra.mxu0 %v889
        %1599 = vmatpush.bf16.msra.mxu0 %v885
        %1600 = vmatpush.bf16.msra.mxu0 %v881
        %1601 = vmatmul.bf16.gmra.mxu0 %v1561
        %v1602 = vpop.f32.mrf.mxu0
        %v1603 = vadd.f32 0.0, %v1602
        %v1604 = vpop.f32.mrf.mxu0
        %1605 = vdwg.mxu0
        %1606 = vmatpush.bf16.msra.mxu0 %v910
        %1607 = vmatpush.bf16.msra.mxu0 %v906
        %1608 = vmatpush.bf16.msra.mxu0 %v902
        %1609 = vmatpush.bf16.msra.mxu0 %v898
        %1610 = vmatpush.bf16.msra.mxu0 %v894
        %1611 = vmatpush.bf16.msra.mxu0 %v890
        %1612 = vmatpush.bf16.msra.mxu0 %v886
        %1613 = vmatpush.bf16.msra.mxu0 %v882
        %1614 = vmatmul.bf16.gmra.mxu0 %v1561
        %v1615 = vpop.f32.mrf.mxu0
        %v1616 = vadd.f32 0.0, %v1615
        %v1617 = vpop.f32.mrf.mxu0
        %1618 = vdwg.mxu0
        %v1619 = vadd.f32 %v689, %v1577
        %v1620 = vadd.f32 %v718, %v1590
        %v1621 = vadd.f32 %v747, %v1603
        %v1622 = vadd.f32 %v776, %v1616
        %v1623 = vxor.u32 %v1619, 2147483648
        %v1624 = vxor.u32 %v1620, 2147483648
        %v1625 = vxor.u32 %v1621, 2147483648
        %v1626 = vmul.f32 %v1623, 1.442695
        %v1627 = vpow.pop %v1626
        %v1628 = vmul.f32 %v1624, 1.442695
        %v1629 = vpow.pop %v1628
        %v1630 = vmul.f32 %v1625, 1.442695
        %v1631 = vpow.pop %v1630
        %v1632 = vadd.f32 %v1627, 1.0
        %v1633 = vadd.f32 %v1629, 1.0
        %v1634 = vadd.f32 %v1631, 1.0
        %v1635 = vrcp.pop %v1632
        %v1636 = vmul.f32 %v1632, %v1635
        %v1637 = vsub.f32 1.0, %v1636
        %v1638 = vmul.f32 %v1635, %v1637
        %v1639 = vadd.f32 %v1635, %v1638
        %vm1640 = vweird.f32 %v1632
        %vm1641 = vweird.f32 %v1635
        %vm1642 = vmor %vm1640, %vm1641
        %v1643 = vsel %vm1642, %v1635, %v1639
        %v1644 = vand.u32 2147483647, %v1632
        %vm1645 = vcmp.eq.f32.partialorder %v1644, 8.507059e+37
        %v1646 = vand.u32 %v1632, 2147483648
        %v1647 = vor.u32 1.1754944e-38, %v1646
        %v1648 = vsel %vm1645, %v1647, %v1643
        %v1649 = vmul.f32 1.0, %v1648
        %v1650 = vrcp.pop %v1633
        %v1651 = vmul.f32 %v1633, %v1650
        %v1652 = vsub.f32 1.0, %v1651
        %v1653 = vmul.f32 %v1650, %v1652
        %v1654 = vadd.f32 %v1650, %v1653
        %vm1655 = vweird.f32 %v1633
        %vm1656 = vweird.f32 %v1650
        %vm1657 = vmor %vm1655, %vm1656
        %v1658 = vsel %vm1657, %v1650, %v1654
        %v1659 = vand.u32 2147483647, %v1633
        %vm1660 = vcmp.eq.f32.partialorder %v1659, 8.507059e+37
        %v1661 = vand.u32 %v1633, 2147483648
        %v1662 = vor.u32 1.1754944e-38, %v1661
        %v1663 = vsel %vm1660, %v1662, %v1658
        %v1664 = vmul.f32 1.0, %v1663
        %v1665 = vrcp.pop %v1634
        %v1666 = vmul.f32 %v1634, %v1665
        %v1667 = vsub.f32 1.0, %v1666
        %v1668 = vmul.f32 %v1665, %v1667
        %v1669 = vadd.f32 %v1665, %v1668
        %vm1670 = vweird.f32 %v1634
        %vm1671 = vweird.f32 %v1665
        %vm1672 = vmor %vm1670, %vm1671
        %v1673 = vsel %vm1672, %v1665, %v1669
        %v1674 = vand.u32 2147483647, %v1634
        %vm1675 = vcmp.eq.f32.partialorder %v1674, 8.507059e+37
        %v1676 = vand.u32 %v1634, 2147483648
        %v1677 = vor.u32 1.1754944e-38, %v1676
        %v1678 = vsel %vm1675, %v1677, %v1673
        %v1679 = vmul.f32 1.0, %v1678
        %v1680 = vtanh.pop %v1622
        %v1681 = vmul.f32 %v1664, %v1558
        %v1682 = vmul.f32 %v1649, %v1680
        %v1683 = vadd.f32 %v1681, %v1682
        %v1684 = vtanh.pop %v1683
        %v1685 = vmul.f32 %v1679, %v1684
        %v1686 = vpack.c.bf16 %v1685, %v1685
        // Predicated region
        $region81: #{rnn_model_forward.1} parent=43 // pred_check
          %p1687 = pneg %p465
        $region82: #{rnn_model_forward.1} parent=43 // pred_check_branch
          %1689 = sbr.rel (%p1687) target = $region84
        $region83: #{rnn_model_forward.1} parent=43 // pred_region
          %s1690 = scalar_lea.vmem [#allocation2], 20
          %1691 = vst [vmem:[%s1690] sm:$0xf] %v1686
        $region84: #{rnn_model_forward.1} parent=43 // pred_fallthru
          _
        %1692 = vmatpush.bf16.msra.mxu0 %v907
        %1693 = vmatpush.bf16.msra.mxu0 %v903
        %1694 = vmatpush.bf16.msra.mxu0 %v899
        %1695 = vmatpush.bf16.msra.mxu0 %v895
        %1696 = vmatpush.bf16.msra.mxu0 %v891
        %1697 = vmatpush.bf16.msra.mxu0 %v887
        %1698 = vmatpush.bf16.msra.mxu0 %v883
        %1699 = vmatpush.bf16.msra.mxu0 %v879
        %1700 = vmatmul.bf16.gmra.mxu0 %v1686
        %v1701 = vpop.f32.mrf.mxu0
        %v1702 = vadd.f32 0.0, %v1701
        %v1703 = vpop.f32.mrf.mxu0
        %1704 = vdwg.mxu0
        %1705 = vmatpush.bf16.msra.mxu0 %v908
        %1706 = vmatpush.bf16.msra.mxu0 %v904
        %1707 = vmatpush.bf16.msra.mxu0 %v900
        %1708 = vmatpush.bf16.msra.mxu0 %v896
        %1709 = vmatpush.bf16.msra.mxu0 %v892
        %1710 = vmatpush.bf16.msra.mxu0 %v888
        %1711 = vmatpush.bf16.msra.mxu0 %v884
        %1712 = vmatpush.bf16.msra.mxu0 %v880
        %1713 = vmatmul.bf16.gmra.mxu0 %v1686
        %v1714 = vpop.f32.mrf.mxu0
        %v1715 = vadd.f32 0.0, %v1714
        %v1716 = vpop.f32.mrf.mxu0
        %1717 = vdwg.mxu0
        %1718 = vmatpush.bf16.msra.mxu0 %v909
        %1719 = vmatpush.bf16.msra.mxu0 %v905
        %1720 = vmatpush.bf16.msra.mxu0 %v901
        %1721 = vmatpush.bf16.msra.mxu0 %v897
        %1722 = vmatpush.bf16.msra.mxu0 %v893
        %1723 = vmatpush.bf16.msra.mxu0 %v889
        %1724 = vmatpush.bf16.msra.mxu0 %v885
        %1725 = vmatpush.bf16.msra.mxu0 %v881
        %1726 = vmatmul.bf16.gmra.mxu0 %v1686
        %v1727 = vpop.f32.mrf.mxu0
        %v1728 = vadd.f32 0.0, %v1727
        %v1729 = vpop.f32.mrf.mxu0
        %1730 = vdwg.mxu0
        %1731 = vmatpush.bf16.msra.mxu0 %v910
        %1732 = vmatpush.bf16.msra.mxu0 %v906
        %1733 = vmatpush.bf16.msra.mxu0 %v902
        %1734 = vmatpush.bf16.msra.mxu0 %v898
        %1735 = vmatpush.bf16.msra.mxu0 %v894
        %1736 = vmatpush.bf16.msra.mxu0 %v890
        %1737 = vmatpush.bf16.msra.mxu0 %v886
        %1738 = vmatpush.bf16.msra.mxu0 %v882
        %1739 = vmatmul.bf16.gmra.mxu0 %v1686
        %v1740 = vpop.f32.mrf.mxu0
        %v1741 = vadd.f32 0.0, %v1740
        %v1742 = vpop.f32.mrf.mxu0
        %1743 = vdwg.mxu0
        %v1744 = vadd.f32 %v692, %v1702
        %v1745 = vadd.f32 %v721, %v1715
        %v1746 = vadd.f32 %v750, %v1728
        %v1747 = vadd.f32 %v779, %v1741
        %v1748 = vxor.u32 %v1744, 2147483648
        %v1749 = vxor.u32 %v1745, 2147483648
        %v1750 = vxor.u32 %v1746, 2147483648
        %v1751 = vmul.f32 %v1748, 1.442695
        %v1752 = vpow.pop %v1751
        %v1753 = vmul.f32 %v1749, 1.442695
        %v1754 = vpow.pop %v1753
        %v1755 = vmul.f32 %v1750, 1.442695
        %v1756 = vpow.pop %v1755
        %v1757 = vadd.f32 %v1752, 1.0
        %v1758 = vadd.f32 %v1754, 1.0
        %v1759 = vadd.f32 %v1756, 1.0
        %v1760 = vrcp.pop %v1757
        %v1761 = vmul.f32 %v1757, %v1760
        %v1762 = vsub.f32 1.0, %v1761
        %v1763 = vmul.f32 %v1760, %v1762
        %v1764 = vadd.f32 %v1760, %v1763
        %vm1765 = vweird.f32 %v1757
        %vm1766 = vweird.f32 %v1760
        %vm1767 = vmor %vm1765, %vm1766
        %v1768 = vsel %vm1767, %v1760, %v1764
        %v1769 = vand.u32 2147483647, %v1757
        %vm1770 = vcmp.eq.f32.partialorder %v1769, 8.507059e+37
        %v1771 = vand.u32 %v1757, 2147483648
        %v1772 = vor.u32 1.1754944e-38, %v1771
        %v1773 = vsel %vm1770, %v1772, %v1768
        %v1774 = vmul.f32 1.0, %v1773
        %v1775 = vrcp.pop %v1758
        %v1776 = vmul.f32 %v1758, %v1775
        %v1777 = vsub.f32 1.0, %v1776
        %v1778 = vmul.f32 %v1775, %v1777
        %v1779 = vadd.f32 %v1775, %v1778
        %vm1780 = vweird.f32 %v1758
        %vm1781 = vweird.f32 %v1775
        %vm1782 = vmor %vm1780, %vm1781
        %v1783 = vsel %vm1782, %v1775, %v1779
        %v1784 = vand.u32 2147483647, %v1758
        %vm1785 = vcmp.eq.f32.partialorder %v1784, 8.507059e+37
        %v1786 = vand.u32 %v1758, 2147483648
        %v1787 = vor.u32 1.1754944e-38, %v1786
        %v1788 = vsel %vm1785, %v1787, %v1783
        %v1789 = vmul.f32 1.0, %v1788
        %v1790 = vrcp.pop %v1759
        %v1791 = vmul.f32 %v1759, %v1790
        %v1792 = vsub.f32 1.0, %v1791
        %v1793 = vmul.f32 %v1790, %v1792
        %v1794 = vadd.f32 %v1790, %v1793
        %vm1795 = vweird.f32 %v1759
        %vm1796 = vweird.f32 %v1790
        %vm1797 = vmor %vm1795, %vm1796
        %v1798 = vsel %vm1797, %v1790, %v1794
        %v1799 = vand.u32 2147483647, %v1759
        %vm1800 = vcmp.eq.f32.partialorder %v1799, 8.507059e+37
        %v1801 = vand.u32 %v1759, 2147483648
        %v1802 = vor.u32 1.1754944e-38, %v1801
        %v1803 = vsel %vm1800, %v1802, %v1798
        %v1804 = vmul.f32 1.0, %v1803
        %v1805 = vtanh.pop %v1747
        %v1806 = vmul.f32 %v1789, %v1683
        %v1807 = vmul.f32 %v1774, %v1805
        %v1808 = vadd.f32 %v1806, %v1807
        %v1809 = vtanh.pop %v1808
        %v1810 = vmul.f32 %v1804, %v1809
        %v1811 = vpack.c.bf16 %v1810, %v1810
        // Predicated region
        $region85: #{rnn_model_forward.1} parent=43 // pred_check
          %p1812 = pneg %p465
        $region86: #{rnn_model_forward.1} parent=43 // pred_check_branch
          %1814 = sbr.rel (%p1812) target = $region88
        $region87: #{rnn_model_forward.1} parent=43 // pred_region
          %s1815 = scalar_lea.vmem [#allocation2], 24
          %1816 = vst [vmem:[%s1815] sm:$0xf] %v1811
        $region88: #{rnn_model_forward.1} parent=43 // pred_fallthru
          _
        %1817 = vmatpush.bf16.msra.mxu0 %v907
        %1818 = vmatpush.bf16.msra.mxu0 %v903
        %1819 = vmatpush.bf16.msra.mxu0 %v899
        %1820 = vmatpush.bf16.msra.mxu0 %v895
        %1821 = vmatpush.bf16.msra.mxu0 %v891
        %1822 = vmatpush.bf16.msra.mxu0 %v887
        %1823 = vmatpush.bf16.msra.mxu0 %v883
        %1824 = vmatpush.bf16.msra.mxu0 %v879
        %1825 = vmatmul.bf16.gmra.mxu0 %v1811
        %v1826 = vpop.f32.mrf.mxu0
        %v1827 = vadd.f32 0.0, %v1826
        %v1828 = vpop.f32.mrf.mxu0
        %1829 = vdwg.mxu0
        %1830 = vmatpush.bf16.msra.mxu0 %v908
        %1831 = vmatpush.bf16.msra.mxu0 %v904
        %1832 = vmatpush.bf16.msra.mxu0 %v900
        %1833 = vmatpush.bf16.msra.mxu0 %v896
        %1834 = vmatpush.bf16.msra.mxu0 %v892
        %1835 = vmatpush.bf16.msra.mxu0 %v888
        %1836 = vmatpush.bf16.msra.mxu0 %v884
        %1837 = vmatpush.bf16.msra.mxu0 %v880
        %1838 = vmatmul.bf16.gmra.mxu0 %v1811
        %v1839 = vpop.f32.mrf.mxu0
        %v1840 = vadd.f32 0.0, %v1839
        %v1841 = vpop.f32.mrf.mxu0
        %1842 = vdwg.mxu0
        %1843 = vmatpush.bf16.msra.mxu0 %v909
        %1844 = vmatpush.bf16.msra.mxu0 %v905
        %1845 = vmatpush.bf16.msra.mxu0 %v901
        %1846 = vmatpush.bf16.msra.mxu0 %v897
        %1847 = vmatpush.bf16.msra.mxu0 %v893
        %1848 = vmatpush.bf16.msra.mxu0 %v889
        %1849 = vmatpush.bf16.msra.mxu0 %v885
        %1850 = vmatpush.bf16.msra.mxu0 %v881
        %1851 = vmatmul.bf16.gmra.mxu0 %v1811
        %v1852 = vpop.f32.mrf.mxu0
        %v1853 = vadd.f32 0.0, %v1852
        %v1854 = vpop.f32.mrf.mxu0
        %1855 = vdwg.mxu0
        %1856 = vmatpush.bf16.msra.mxu0 %v910
        %1857 = vmatpush.bf16.msra.mxu0 %v906
        %1858 = vmatpush.bf16.msra.mxu0 %v902
        %1859 = vmatpush.bf16.msra.mxu0 %v898
        %1860 = vmatpush.bf16.msra.mxu0 %v894
        %1861 = vmatpush.bf16.msra.mxu0 %v890
        %1862 = vmatpush.bf16.msra.mxu0 %v886
        %1863 = vmatpush.bf16.msra.mxu0 %v882
        %1864 = vmatmul.bf16.gmra.mxu0 %v1811
        %v1865 = vpop.f32.mrf.mxu0
        %v1866 = vadd.f32 0.0, %v1865
        %v1867 = vpop.f32.mrf.mxu0
        %1868 = vdwg.mxu0
        %v1869 = vadd.f32 %v694, %v1827
        %v1870 = vadd.f32 %v723, %v1840
        %v1871 = vadd.f32 %v752, %v1853
        %v1872 = vadd.f32 %v781, %v1866
        %v1873 = vxor.u32 %v1869, 2147483648
        %v1874 = vxor.u32 %v1870, 2147483648
        %v1875 = vxor.u32 %v1871, 2147483648
        %v1876 = vmul.f32 %v1873, 1.442695
        %v1877 = vpow.pop %v1876
        %v1878 = vmul.f32 %v1874, 1.442695
        %v1879 = vpow.pop %v1878
        %v1880 = vmul.f32 %v1875, 1.442695
        %v1881 = vpow.pop %v1880
        %v1882 = vadd.f32 %v1877, 1.0
        %v1883 = vadd.f32 %v1879, 1.0
        %v1884 = vadd.f32 %v1881, 1.0
        %v1885 = vrcp.pop %v1882
        %v1886 = vmul.f32 %v1882, %v1885
        %v1887 = vsub.f32 1.0, %v1886
        %v1888 = vmul.f32 %v1885, %v1887
        %v1889 = vadd.f32 %v1885, %v1888
        %vm1890 = vweird.f32 %v1882
        %vm1891 = vweird.f32 %v1885
        %vm1892 = vmor %vm1890, %vm1891
        %v1893 = vsel %vm1892, %v1885, %v1889
        %v1894 = vand.u32 2147483647, %v1882
        %vm1895 = vcmp.eq.f32.partialorder %v1894, 8.507059e+37
        %v1896 = vand.u32 %v1882, 2147483648
        %v1897 = vor.u32 1.1754944e-38, %v1896
        %v1898 = vsel %vm1895, %v1897, %v1893
        %v1899 = vmul.f32 1.0, %v1898
        %v1900 = vrcp.pop %v1883
        %v1901 = vmul.f32 %v1883, %v1900
        %v1902 = vsub.f32 1.0, %v1901
        %v1903 = vmul.f32 %v1900, %v1902
        %v1904 = vadd.f32 %v1900, %v1903
        %vm1905 = vweird.f32 %v1883
        %vm1906 = vweird.f32 %v1900
        %vm1907 = vmor %vm1905, %vm1906
        %v1908 = vsel %vm1907, %v1900, %v1904
        %v1909 = vand.u32 2147483647, %v1883
        %vm1910 = vcmp.eq.f32.partialorder %v1909, 8.507059e+37
        %v1911 = vand.u32 %v1883, 2147483648
        %v1912 = vor.u32 1.1754944e-38, %v1911
        %v1913 = vsel %vm1910, %v1912, %v1908
        %v1914 = vmul.f32 1.0, %v1913
        %v1915 = vrcp.pop %v1884
        %v1916 = vmul.f32 %v1884, %v1915
        %v1917 = vsub.f32 1.0, %v1916
        %v1918 = vmul.f32 %v1915, %v1917
        %v1919 = vadd.f32 %v1915, %v1918
        %vm1920 = vweird.f32 %v1884
        %vm1921 = vweird.f32 %v1915
        %vm1922 = vmor %vm1920, %vm1921
        %v1923 = vsel %vm1922, %v1915, %v1919
        %v1924 = vand.u32 2147483647, %v1884
        %vm1925 = vcmp.eq.f32.partialorder %v1924, 8.507059e+37
        %v1926 = vand.u32 %v1884, 2147483648
        %v1927 = vor.u32 1.1754944e-38, %v1926
        %v1928 = vsel %vm1925, %v1927, %v1923
        %v1929 = vmul.f32 1.0, %v1928
        %v1930 = vtanh.pop %v1872
        %v1931 = vmul.f32 %v1914, %v1808
        %v1932 = vmul.f32 %v1899, %v1930
        %v1933 = vadd.f32 %v1931, %v1932
        %v1934 = vtanh.pop %v1933
        %v1935 = vmul.f32 %v1929, %v1934
        %v1936 = vpack.c.bf16 %v1935, %v1935
        // Predicated region
        $region89: #{rnn_model_forward.1} parent=43 // pred_check
          %p1937 = pneg %p465
        $region90: #{rnn_model_forward.1} parent=43 // pred_check_branch
          %1939 = sbr.rel (%p1937) target = $region92
        $region91: #{rnn_model_forward.1} parent=43 // pred_region
          %s1940 = scalar_lea.vmem [#allocation2], 28
          %1941 = vst [vmem:[%s1940] sm:$0xf] %v1936
        $region92: #{rnn_model_forward.1} parent=43 // pred_fallthru
          _
        %p1942 = scmp.eq.s32.totalorder %s28, 1
        // Predicated region
        $region93: #{rnn_model_forward.1} parent=43 // pred_check
          %p1943 = pneg %p1942
        $region94: #{rnn_model_forward.1} parent=43 // pred_check_branch
          %1945 = sbr.rel (%p1943) target = $region96
        $region95: #{rnn_model_forward.1} parent=43 // pred_region
          %v1946 = vld [vmem:[%s4] sm:$0xf]
          %v1947 = vld [vmem:[%s4 + $0x4] sm:$0xf]
          %v1948 = vld [vmem:[%s4 + $0x8] sm:$0xf]
          %v1949 = vld [vmem:[%s4 + $0xc] sm:$0xf]
          %v1950 = vld [vmem:[%s4 + $0x10] sm:$0xf]
          %v1951 = vld [vmem:[%s4 + $0x14] sm:$0xf]
          %v1952 = vld [vmem:[%s4 + $0x18] sm:$0xf]
          %v1953 = vld [vmem:[%s4 + $0x1c] sm:$0xf]
          %v1954 = vld [vmem:[%s4 + $0x20] sm:$0xf]
          %v1955 = vld [vmem:[%s4 + $0x24] sm:$0xf]
          %v1956 = vld [vmem:[%s4 + $0x28] sm:$0xf]
          %v1957 = vld [vmem:[%s4 + $0x2c] sm:$0xf]
          %v1958 = vld [vmem:[%s4 + $0x30] sm:$0xf]
          %v1959 = vld [vmem:[%s4 + $0x34] sm:$0xf]
          %v1960 = vld [vmem:[%s4 + $0x38] sm:$0xf]
          %v1961 = vld [vmem:[%s4 + $0x3c] sm:$0xf]
          %v1962 = vld [vmem:[%s5] sm:$0x1]
          %v1964 = vperm.slane %v1962, 0
          %v1982 = vunpack.c.l.b16 %v1946
          %v1983 = vunpack.c.l.b16 %v1947
          %v1984 = vunpack.c.l.b16 %v1948
          %v1985 = vunpack.c.l.b16 %v1949
          %v1986 = vunpack.c.l.b16 %v1950
          %v1987 = vunpack.c.l.b16 %v1951
          %v1988 = vunpack.c.l.b16 %v1952
          %v1989 = vunpack.c.l.b16 %v1953
          %v1990 = vunpack.c.l.b16 %v1954
          %v1991 = vunpack.c.l.b16 %v1955
          %v1992 = vunpack.c.l.b16 %v1956
          %v1993 = vunpack.c.l.b16 %v1957
          %v1994 = vunpack.c.l.b16 %v1958
          %v1995 = vunpack.c.l.b16 %v1959
          %v1996 = vunpack.c.l.b16 %v1960
          %v1997 = vunpack.c.l.b16 %v1961
          %v1998 = vpack.c.b16 %v1983, %v1982
          %v1999 = vpack.c.b16 %v1985, %v1984
          %v2000 = vpack.c.b16 %v1987, %v1986
          %v2001 = vpack.c.b16 %v1989, %v1988
          %v2002 = vpack.c.b16 %v1991, %v1990
          %v2003 = vpack.c.b16 %v1993, %v1992
          %v2004 = vpack.c.b16 %v1995, %v1994
          %v2005 = vpack.c.b16 %v1997, %v1996
          %2014 = vmatpush.bf16.msra.mxu0 %v2005
          %2015 = vmatpush.bf16.msra.mxu0 %v2004
          %2016 = vmatpush.bf16.msra.mxu0 %v2003
          %2017 = vmatpush.bf16.msra.mxu0 %v2002
          %2018 = vmatpush.bf16.msra.mxu0 %v2001
          %2019 = vmatpush.bf16.msra.mxu0 %v2000
          %2020 = vmatpush.bf16.msra.mxu0 %v1999
          %2021 = vmatpush.bf16.msra.mxu0 %v1998
          %2022 = vmatmul.bf16.gmra.mxu0 %v1936
          %v2023 = vpop.f32.mrf.mxu0
          %v2024 = vadd.f32 %v1964, %v2023
          %v2025 = vpop.f32.mrf.mxu0
          %2026 = vdwg.mxu0
          %2027 = vst [vmem:[%s378] sm:$0xff] %v2024
        $region96: #{rnn_model_forward.1} parent=43 // pred_fallthru
          _
        %p2028 = scmp.lt.s32.totalorder %s27, 0
        %s2029 = scalar_select %p2028, %s27, 0
        %s2030 = smul.addr %s2029, 8
        %s2031 = scalar_lea.vmem %s6, %s2030
        // Predicated region
        $region97: #{rnn_model_forward.1} parent=43 // pred_check
          %p2032 = pneg %p199
        $region98: #{rnn_model_forward.1} parent=43 // pred_check_branch
          %2034 = sbr.rel (%p2032) target = $region100
        $region99: #{rnn_model_forward.1} parent=43 // pred_region
          _
        $region100: #{rnn_model_forward.1} parent=43 // pred_fallthru
          _
        // Predicated region
        $region101: #{rnn_model_forward.1} parent=43 // pred_check
          %p2035 = pneg %p199
        $region102: #{rnn_model_forward.1} parent=43 // pred_check_branch
          %2037 = sbr.rel (%p2035) target = $region104
        $region103: #{rnn_model_forward.1} parent=43 // pred_region
          %p2038 = scmp.lt.s32.totalorder %s27, 0
          %s2039 = scalar_select %p2038, %s27, 0
          %s2040 = smul.addr %s2039, 8
          %s2041 = scalar_lea.vmem %s6, %s2040
        $region104: #{rnn_model_forward.1} parent=43 // pred_fallthru
          _
      $region44: #{rnn_model_forward.1} parent=5 // pred_fallthru
        _
      %p2042 = scmp.le.s32.totalorder 2, %s18
      // Predicated region
      $region105: #{rnn_model_forward.1} parent=5 // pred_check
        %p2043 = pneg %p2042
      $region106: #{rnn_model_forward.1} parent=5 // pred_check_branch
        %2045 = sbr.rel (%p2043) target = $region108
      $region107: #{rnn_model_forward.1} parent=5 // pred_region
        %s2046 = ssub.s32 %s18, 2
      $region108: #{rnn_model_forward.1} parent=5 // pred_fallthru
        _
    $region6: #{rnn_model_forward.1} parent=1 // loop_footer
      %s22 = sadd.s32 1, %s18
    $region7: #{rnn_model_forward.1} parent=1 // loop_footer_branch
      %17 = sbr.rel target = $region3
    $region8: #{rnn_model_forward.1} parent=1 // loop_exit
      _
    %2047 = vsyncpa [#allocation4], 1
    %s2048 = scalar_lea.sflag [#allocation4], 1
    %2049 = vsyncpa %s2048, 1
    %2050 = vsyncpa [#allocation6], 1
    %s2051 = scalar_lea.sflag [#allocation6], 1
    %2052 = vsyncpa %s2051, 1

</llo_original>
